<compile_context>
chip_gen: v7x
topology: tpu7x:2x2x1
jax: 0.10.0
libtpu: 0.0.40
codegen_flags: <defaults>
</compile_context>

<pallas_src>
import functools

import jax
import jax.numpy as jnp
from jax import lax
from jax.experimental import pallas as pl
from jax.experimental.pallas import tpu as pltpu


LANE = 128  # TPU lane width; gate / class blocks are padded to this.


def _round_up(n, m):
    return ((n + m - 1) // m) * m


def _bilstm_fc_kernel(locs_ref, times_ref,
                      wih_f_ref, whh_f_ref, b_f_ref,
                      wih_b_ref, b_b_ref,
                      wfc_f_ref, wfc_b_ref, bfc_ref,
                      out_ref, gx_ref):
    """BiLSTM (last timestep only) + FC, lane-aligned.

    locs_ref, times_ref : (T, B, 1) f32   time-major inputs
    wih_f_ref           : (2, 4*Hp) f32   forward input weights (gate-padded)
    whh_f_ref           : (Hp, 4*Hp) f32  forward recurrent weights
    b_f_ref             : (1, 4*Hp) f32   forward bias (b_ih + b_hh)
    wih_b_ref, b_b_ref  : backward input weights / bias (whh_b not needed)
    wfc_f_ref, wfc_b_ref: (Hp, Cp) f32    fc weight split into fwd/bwd halves
    bfc_ref             : (1, Cp) f32
    out_ref             : (B, Cp) f32
    gx_ref              : (T, B, 4*Hp) f32 VMEM scratch (hoisted input proj.)
    """
    T, B, _ = locs_ref.shape
    Hp = whh_f_ref.shape[0]

    # ---- hoisted input projection (VPU broadcast-FMA, once for all t) ------
    wih_f = wih_f_ref[...]                                    # (2, 4Hp)
    gx_ref[...] = (locs_ref[...] * wih_f[0:1, :][None, :, :]
                   + times_ref[...] * wih_f[1:2, :][None, :, :]
                   + b_f_ref[...][None, :, :])                # (T, B, 4Hp)

    whh_f = whh_f_ref[...]                                    # (Hp, 4Hp)

    def gates_to_ifgo(gates):
        # PyTorch gate order: i, f, g, o; each block is Hp = 128 lanes wide,
        # so every slice is vreg-aligned (no lane shuffles).
        i = jax.nn.sigmoid(gates[:, 0 * Hp:1 * Hp])
        f = jax.nn.sigmoid(gates[:, 1 * Hp:2 * Hp])
        g = jnp.tanh(gates[:, 2 * Hp:3 * Hp])
        o = jax.nn.sigmoid(gates[:, 3 * Hp:4 * Hp])
        return i, f, g, o

    # ---- forward recurrence: per step only h @ Whh + add + activations -----
    def step(t, carry):
        h, c = carry
        gates = gx_ref[t] + jnp.dot(h, whh_f,
                                    preferred_element_type=jnp.float32)
        i, f, g, o = gates_to_ifgo(gates)
        c_new = f * c + i * g
        h_new = o * jnp.tanh(c_new)
        return h_new, c_new

    h0 = jnp.zeros((B, Hp), jnp.float32)
    c0 = jnp.zeros((B, Hp), jnp.float32)
    unroll = True if T <= 16 else 8
    h_fwd, _ = lax.fori_loop(0, T, step, (h0, c0), unroll=unroll)

    # ---- reverse direction output at t = T-1: one step from zero state -----
    # h0 = c0 = 0  =>  gates = x[:, T-1, :] @ Wih_b + b_b  and  c = i * g.
    wih_b = wih_b_ref[...]                                    # (2, 4Hp)
    gates_b = (locs_ref[T - 1] * wih_b[0:1, :]
               + times_ref[T - 1] * wih_b[1:2, :]
               + b_b_ref[...])                                # (B, 4Hp)
    i_b, _, g_b, o_b = gates_to_ifgo(gates_b)
    h_bwd = o_b * jnp.tanh(i_b * g_b)

    # ---- fc: two lane-dense matmuls instead of concat + one matmul ---------
    logits = (jnp.dot(h_fwd, wfc_f_ref[...],
                      preferred_element_type=jnp.float32)
              + jnp.dot(h_bwd, wfc_b_ref[...],
                        preferred_element_type=jnp.float32)
              + bfc_ref[...])
    out_ref[...] = logits.astype(out_ref.dtype)


def prepare_kernel_params(params):
    """Pad / split the (pre-transposed) PyTorch-layout params for the kernel.

    Gate blocks are padded H -> Hp (=128) with zero columns, recurrent weights
    get zero rows for the padded hidden lanes, and the fc weight is split into
    forward / backward halves padded to (Hp, Cp). Zero padding guarantees the
    padded hidden lanes stay exactly 0 through the recurrence and never reach
    the logits.
    """
    H = params["whh_f"].shape[0]
    C = params["wfc"].shape[1]
    Hp = _round_up(H, LANE)
    Cp = _round_up(C, LANE)

    def pad_gates(w):
        # (in, 4H) -> (in, 4*Hp): each of the 4 gate blocks padded to Hp.
        blocks = [jnp.pad(w[:, k * H:(k + 1) * H], ((0, 0), (0, Hp - H)))
                  for k in range(4)]
        return jnp.concatenate(blocks, axis=1)

    kparams = {
        "wih_f": pad_gates(params["wih_f"]),                          # (2, 4Hp)
        "whh_f": jnp.pad(pad_gates(params["whh_f"]),
                         ((0, Hp - H), (0, 0))),                      # (Hp, 4Hp)
        "b_f":   pad_gates(params["b_f"]),                            # (1, 4Hp)
        "wih_b": pad_gates(params["wih_b"]),                          # (2, 4Hp)
        "b_b":   pad_gates(params["b_b"]),                            # (1, 4Hp)
        # whh_b is mathematically irrelevant (multiplies h0 = 0) -> not passed.
        "wfc_f": jnp.pad(params["wfc"][:H], ((0, Hp - H), (0, Cp - C))),
        "wfc_b": jnp.pad(params["wfc"][H:], ((0, Hp - H), (0, Cp - C))),
        "bfc":   jnp.pad(params["bfc"], ((0, 0), (0, Cp - C))),       # (1, Cp)
    }
    return kparams


def my_model_forward(locs, times, kparams, *, num_classes):
    """locs, times: (B, T) float32. Returns (B, num_classes) float32."""
    locs = locs.astype(jnp.float32)
    times = times.astype(jnp.float32)
    B, T = locs.shape
    Hp = kparams["whh_f"].shape[0]
    Cp = kparams["bfc"].shape[1]

    # Time-major, no (B, T, 2) lane-dim-2 concat materialization.
    locs_t = locs.T[:, :, None]    # (T, B, 1)
    times_t = times.T[:, :, None]  # (T, B, 1)

    vmem = pl.BlockSpec(memory_space=pltpu.MemorySpace.VMEM)
    out_padded = pl.pallas_call(
        _bilstm_fc_kernel,
        out_shape=jax.ShapeDtypeStruct((B, Cp), jnp.float32),
        in_specs=[vmem] * 10,
        out_specs=vmem,
        scratch_shapes=[pltpu.VMEM((T, B, 4 * Hp), jnp.float32)],
    )(locs_t, times_t,
      kparams["wih_f"], kparams["whh_f"], kparams["b_f"],
      kparams["wih_b"], kparams["b_b"],
      kparams["wfc_f"], kparams["wfc_b"], kparams["bfc"])
    # Lane-padded output -> slice the real classes.
    return out_padded[:, :num_classes]


def init_params(key, input_size, hidden_size, num_classes):
    """Deterministic init; PyTorch-style U(-1/sqrt(H), 1/sqrt(H)).

    Weights are stored pre-transposed: (in_dim, out_dim); LSTM bias = b_ih + b_hh.
    """
    H, F, C = hidden_size, input_size, num_classes
    k = 1.0 / jnp.sqrt(jnp.float32(H))
    keys = jax.random.split(key, 11)

    def u(kk, shape):
        return jax.random.uniform(kk, shape, jnp.float32, -k, k)

    return {
        "wih_f": u(keys[0], (F, 4 * H)),
        "whh_f": u(keys[1], (H, 4 * H)),
        "b_f":   u(keys[2], (1, 4 * H)) + u(keys[3], (1, 4 * H)),
        "wih_b": u(keys[4], (F, 4 * H)),
        "whh_b": u(keys[5], (H, 4 * H)),
        "b_b":   u(keys[6], (1, 4 * H)) + u(keys[7], (1, 4 * H)),
        "wfc":   u(keys[8], (2 * H, C)),
        "bfc":   u(keys[9], (1, C)),
    }


def _reference_forward(locs, times, params):
    """Pure-JAX reference: full bidirectional LSTM + fc on last timestep."""
    x = jnp.concatenate([locs[:, :, None], times[:, :, None]],
                        axis=2).astype(jnp.float32)
    B, T, _ = x.shape
    H = params["whh_f"].shape[0]

    def cell(carry, x_t, wih, whh, b):
        h, c = carry
        gates = x_t @ wih + h @ whh + b
        i = jax.nn.sigmoid(gates[:, 0 * H:1 * H])
        f = jax.nn.sigmoid(gates[:, 1 * H:2 * H])
        g = jnp.tanh(gates[:, 2 * H:3 * H])
        o = jax.nn.sigmoid(gates[:, 3 * H:4 * H])
        c_new = f * c + i * g
        h_new = o * jnp.tanh(c_new)
        return (h_new, c_new), h_new

    init = (jnp.zeros((B, H), jnp.float32), jnp.zeros((B, H), jnp.float32))
    xs = jnp.swapaxes(x, 0, 1)  # (T, B, 2)

    _, h_fwd_seq = lax.scan(
        lambda c_, xt: cell(c_, xt, params["wih_f"], params["whh_f"],
                            params["b_f"]), init, xs)
    _, h_bwd_seq_rev = lax.scan(
        lambda c_, xt: cell(c_, xt, params["wih_b"], params["whh_b"],
                            params["b_b"]), init, xs[::-1])

    h_fwd_last = h_fwd_seq[-1]       # forward output at t = T-1
    h_bwd_last = h_bwd_seq_rev[0]    # reverse output at original t = T-1
    hcat = jnp.concatenate([h_fwd_last, h_bwd_last], axis=1)
    return hcat @ params["wfc"] + params["bfc"]


if __name__ == "__main__":
    B, T = 2, 8            # batch, sequence length
    F = 2                  # input_size: cat(locs, times) along feature dim
    H = 32                 # hidden_size (small for the demo; module uses 64)
    C = 10                 # num_classes

    key = jax.random.PRNGKey(0)
    k_locs, k_times, k_params = jax.random.split(key, 3)
    locs = jax.random.normal(k_locs, (B, T), jnp.float32)
    times = jax.random.normal(k_times, (B, T), jnp.float32)

    params = init_params(k_params, F, H, C)
    kparams = prepare_kernel_params(params)

    fwd = jax.jit(my_model_forward, static_argnames=("num_classes",))
    out = fwd(locs, times, kparams, num_classes=C)
    out = jax.block_until_ready(out)

    ref = _reference_forward(locs, times, params)
    assert out.shape == (B, C)
    assert jnp.allclose(out, ref, rtol=1e-5, atol=1e-5), "mismatch vs JAX reference"

    print("KERNEL_OK")
</pallas_src>

<mosaic_0001>
module attributes {stable_mosaic.version = 11 : i64} {
  func.func @_bilstm_fc_kernel(%arg0: memref<8x2x1xf32, #tpu.memory_space<vmem>>, %arg1: memref<8x2x1xf32, #tpu.memory_space<vmem>>, %arg2: memref<2x512xf32, #tpu.memory_space<vmem>>, %arg3: memref<128x512xf32, #tpu.memory_space<vmem>>, %arg4: memref<1x512xf32, #tpu.memory_space<vmem>>, %arg5: memref<2x512xf32, #tpu.memory_space<vmem>>, %arg6: memref<1x512xf32, #tpu.memory_space<vmem>>, %arg7: memref<128x128xf32, #tpu.memory_space<vmem>>, %arg8: memref<128x128xf32, #tpu.memory_space<vmem>>, %arg9: memref<1x128xf32, #tpu.memory_space<vmem>>, %arg10: memref<2x128xf32, #tpu.memory_space<vmem>>, %arg11: memref<8x2x512xf32, #tpu.memory_space<vmem>>) attributes {dimension_semantics = [], scalar_prefetch = 0 : i64, scratch_operands = 1 : i64, tpu.core_type = #tpu.core_type<tc>} {
    %c0 = arith.constant 0 : index
    %c0_0 = arith.constant 0 : index
    %0 = vector.load %arg2[%c0, %c0_0] : memref<2x512xf32, #tpu.memory_space<vmem>>, vector<2x512xf32>
    %c0_1 = arith.constant 0 : index
    %c0_2 = arith.constant 0 : index
    %c0_3 = arith.constant 0 : index
    %1 = vector.load %arg0[%c0_1, %c0_2, %c0_3] : memref<8x2x1xf32, #tpu.memory_space<vmem>>, vector<8x2x1xf32>
    %2 = vector.extract_strided_slice %0 {offsets = [0, 0], sizes = [1, 512], strides = [1, 1]} : vector<2x512xf32> to vector<1x512xf32>
    %3 = vector.shape_cast %2 : vector<1x512xf32> to vector<1x1x512xf32>
    %4 = vector.broadcast %1 : vector<8x2x1xf32> to vector<8x2x512xf32>
    %5 = vector.broadcast %3 : vector<1x1x512xf32> to vector<8x2x512xf32>
    %6 = arith.mulf %4, %5 : vector<8x2x512xf32>
    %c0_4 = arith.constant 0 : index
    %c0_5 = arith.constant 0 : index
    %c0_6 = arith.constant 0 : index
    %7 = vector.load %arg1[%c0_4, %c0_5, %c0_6] : memref<8x2x1xf32, #tpu.memory_space<vmem>>, vector<8x2x1xf32>
    %8 = vector.extract_strided_slice %0 {offsets = [1, 0], sizes = [1, 512], strides = [1, 1]} : vector<2x512xf32> to vector<1x512xf32>
    %9 = vector.shape_cast %8 : vector<1x512xf32> to vector<1x1x512xf32>
    %10 = vector.broadcast %7 : vector<8x2x1xf32> to vector<8x2x512xf32>
    %11 = vector.broadcast %9 : vector<1x1x512xf32> to vector<8x2x512xf32>
    %12 = arith.mulf %10, %11 : vector<8x2x512xf32>
    %13 = arith.addf %6, %12 : vector<8x2x512xf32>
    %c0_7 = arith.constant 0 : index
    %c0_8 = arith.constant 0 : index
    %14 = vector.load %arg4[%c0_7, %c0_8] : memref<1x512xf32, #tpu.memory_space<vmem>>, vector<1x512xf32>
    %15 = vector.shape_cast %14 : vector<1x512xf32> to vector<1x1x512xf32>
    %16 = vector.broadcast %15 : vector<1x1x512xf32> to vector<8x2x512xf32>
    %17 = arith.addf %13, %16 : vector<8x2x512xf32>
    %c0_9 = arith.constant 0 : index
    %c0_10 = arith.constant 0 : index
    %c0_11 = arith.constant 0 : index
    %18 = vector.load %arg11[%c0_9, %c0_10, %c0_11] : memref<8x2x512xf32, #tpu.memory_space<vmem>>, vector<8x2x512xf32>
    tpu.vector_store %arg11[%c0_9, %c0_10, %c0_11], %17 {strides = array<i32>} : memref<8x2x512xf32, #tpu.memory_space<vmem>>, vector<8x2x512xf32>,
    %c0_12 = arith.constant 0 : index
    %c0_13 = arith.constant 0 : index
    %19 = vector.load %arg3[%c0_12, %c0_13] : memref<128x512xf32, #tpu.memory_space<vmem>>, vector<128x512xf32>
    %cst = arith.constant 0.000000e+00 : f32
    %20 = vector.broadcast %cst : f32 to vector<2x128xf32>
    %cst_14 = arith.constant 0.000000e+00 : f32
    %21 = vector.broadcast %cst_14 : f32 to vector<2x128xf32>
    %c0_i32 = arith.constant 0 : i32
    %22 = arith.index_cast %c0_i32 : i32 to index
    %c0_15 = arith.constant 0 : index
    %c0_16 = arith.constant 0 : index
    %23 = vector.load %arg11[%22, %c0_15, %c0_16] : memref<8x2x512xf32, #tpu.memory_space<vmem>>, vector<1x2x512xf32>
    %24 = vector.shape_cast %23 : vector<1x2x512xf32> to vector<2x512xf32>
    %cst_17 = arith.constant dense<0.000000e+00> : vector<2x512xf32>
    %25 = tpu.matmul %20, %19, %cst_17 {dimension_numbers = #tpu.dot_dimension_numbers<[1], [0], [0], [1], [0, 0, 1, 1], [], []>} : vector<2x128xf32>, vector<128x512xf32>, vector<2x512xf32> -> vector<2x512xf32>
    %26 = arith.addf %24, %25 : vector<2x512xf32>
    %27 = vector.extract_strided_slice %26 {offsets = [0, 0], sizes = [2, 128], strides = [1, 1]} : vector<2x512xf32> to vector<2x128xf32>
    %28 = arith.negf %27 : vector<2x128xf32>
    %29 = math.exp %28 : vector<2x128xf32>
    %cst_18 = arith.constant 1.000000e+00 : f32
    %30 = vector.broadcast %cst_18 : f32 to vector<2x128xf32>
    %31 = arith.addf %30, %29 : vector<2x128xf32>
    %32 = arith.divf %30, %31 : vector<2x128xf32>
    %33 = vector.extract_strided_slice %26 {offsets = [0, 128], sizes = [2, 128], strides = [1, 1]} : vector<2x512xf32> to vector<2x128xf32>
    %34 = arith.negf %33 : vector<2x128xf32>
    %35 = math.exp %34 : vector<2x128xf32>
    %cst_19 = arith.constant 1.000000e+00 : f32
    %36 = vector.broadcast %cst_19 : f32 to vector<2x128xf32>
    %37 = arith.addf %36, %35 : vector<2x128xf32>
    %38 = arith.divf %36, %37 : vector<2x128xf32>
    %39 = vector.extract_strided_slice %26 {offsets = [0, 256], sizes = [2, 128], strides = [1, 1]} : vector<2x512xf32> to vector<2x128xf32>
    %40 = math.tanh %39 : vector<2x128xf32>
    %41 = vector.extract_strided_slice %26 {offsets = [0, 384], sizes = [2, 128], strides = [1, 1]} : vector<2x512xf32> to vector<2x128xf32>
    %42 = arith.negf %41 : vector<2x128xf32>
    %43 = math.exp %42 : vector<2x128xf32>
    %cst_20 = arith.constant 1.000000e+00 : f32
    %44 = vector.broadcast %cst_20 : f32 to vector<2x128xf32>
    %45 = arith.addf %44, %43 : vector<2x128xf32>
    %46 = arith.divf %44, %45 : vector<2x128xf32>
    %47 = arith.mulf %38, %21 : vector<2x128xf32>
    %48 = arith.mulf %32, %40 : vector<2x128xf32>
    %49 = arith.addf %47, %48 : vector<2x128xf32>
    %50 = math.tanh %49 : vector<2x128xf32>
    %51 = arith.mulf %46, %50 : vector<2x128xf32>
    %c1_i32 = arith.constant 1 : i32
    %52 = arith.index_cast %c1_i32 : i32 to index
    %c0_21 = arith.constant 0 : index
    %c0_22 = arith.constant 0 : index
    %53 = vector.load %arg11[%52, %c0_21, %c0_22] : memref<8x2x512xf32, #tpu.memory_space<vmem>>, vector<1x2x512xf32>
    %54 = vector.shape_cast %53 : vector<1x2x512xf32> to vector<2x512xf32>
    %cst_23 = arith.constant dense<0.000000e+00> : vector<2x512xf32>
    %55 = tpu.matmul %51, %19, %cst_23 {dimension_numbers = #tpu.dot_dimension_numbers<[1], [0], [0], [1], [0, 0, 1, 1], [], []>} : vector<2x128xf32>, vector<128x512xf32>, vector<2x512xf32> -> vector<2x512xf32>
    %56 = arith.addf %54, %55 : vector<2x512xf32>
    %57 = vector.extract_strided_slice %56 {offsets = [0, 0], sizes = [2, 128], strides = [1, 1]} : vector<2x512xf32> to vector<2x128xf32>
    %58 = arith.negf %57 : vector<2x128xf32>
    %59 = math.exp %58 : vector<2x128xf32>
    %cst_24 = arith.constant 1.000000e+00 : f32
    %60 = vector.broadcast %cst_24 : f32 to vector<2x128xf32>
    %61 = arith.addf %60, %59 : vector<2x128xf32>
    %62 = arith.divf %60, %61 : vector<2x128xf32>
    %63 = vector.extract_strided_slice %56 {offsets = [0, 128], sizes = [2, 128], strides = [1, 1]} : vector<2x512xf32> to vector<2x128xf32>
    %64 = arith.negf %63 : vector<2x128xf32>
    %65 = math.exp %64 : vector<2x128xf32>
    %cst_25 = arith.constant 1.000000e+00 : f32
    %66 = vector.broadcast %cst_25 : f32 to vector<2x128xf32>
    %67 = arith.addf %66, %65 : vector<2x128xf32>
    %68 = arith.divf %66, %67 : vector<2x128xf32>
    %69 = vector.extract_strided_slice %56 {offsets = [0, 256], sizes = [2, 128], strides = [1, 1]} : vector<2x512xf32> to vector<2x128xf32>
    %70 = math.tanh %69 : vector<2x128xf32>
    %71 = vector.extract_strided_slice %56 {offsets = [0, 384], sizes = [2, 128], strides = [1, 1]} : vector<2x512xf32> to vector<2x128xf32>
    %72 = arith.negf %71 : vector<2x128xf32>
    %73 = math.exp %72 : vector<2x128xf32>
    %cst_26 = arith.constant 1.000000e+00 : f32
    %74 = vector.broadcast %cst_26 : f32 to vector<2x128xf32>
    %75 = arith.addf %74, %73 : vector<2x128xf32>
    %76 = arith.divf %74, %75 : vector<2x128xf32>
    %77 = arith.mulf %68, %49 : vector<2x128xf32>
    %78 = arith.mulf %62, %70 : vector<2x128xf32>
    %79 = arith.addf %77, %78 : vector<2x128xf32>
    %80 = math.tanh %79 : vector<2x128xf32>
    %81 = arith.mulf %76, %80 : vector<2x128xf32>
    %c2_i32 = arith.constant 2 : i32
    %82 = arith.index_cast %c2_i32 : i32 to index
    %c0_27 = arith.constant 0 : index
    %c0_28 = arith.constant 0 : index
    %83 = vector.load %arg11[%82, %c0_27, %c0_28] : memref<8x2x512xf32, #tpu.memory_space<vmem>>, vector<1x2x512xf32>
    %84 = vector.shape_cast %83 : vector<1x2x512xf32> to vector<2x512xf32>
    %cst_29 = arith.constant dense<0.000000e+00> : vector<2x512xf32>
    %85 = tpu.matmul %81, %19, %cst_29 {dimension_numbers = #tpu.dot_dimension_numbers<[1], [0], [0], [1], [0, 0, 1, 1], [], []>} : vector<2x128xf32>, vector<128x512xf32>, vector<2x512xf32> -> vector<2x512xf32>
    %86 = arith.addf %84, %85 : vector<2x512xf32>
    %87 = vector.extract_strided_slice %86 {offsets = [0, 0], sizes = [2, 128], strides = [1, 1]} : vector<2x512xf32> to vector<2x128xf32>
    %88 = arith.negf %87 : vector<2x128xf32>
    %89 = math.exp %88 : vector<2x128xf32>
    %cst_30 = arith.constant 1.000000e+00 : f32
    %90 = vector.broadcast %cst_30 : f32 to vector<2x128xf32>
    %91 = arith.addf %90, %89 : vector<2x128xf32>
    %92 = arith.divf %90, %91 : vector<2x128xf32>
    %93 = vector.extract_strided_slice %86 {offsets = [0, 128], sizes = [2, 128], strides = [1, 1]} : vector<2x512xf32> to vector<2x128xf32>
    %94 = arith.negf %93 : vector<2x128xf32>
    %95 = math.exp %94 : vector<2x128xf32>
    %cst_31 = arith.constant 1.000000e+00 : f32
    %96 = vector.broadcast %cst_31 : f32 to vector<2x128xf32>
    %97 = arith.addf %96, %95 : vector<2x128xf32>
    %98 = arith.divf %96, %97 : vector<2x128xf32>
    %99 = vector.extract_strided_slice %86 {offsets = [0, 256], sizes = [2, 128], strides = [1, 1]} : vector<2x512xf32> to vector<2x128xf32>
    %100 = math.tanh %99 : vector<2x128xf32>
    %101 = vector.extract_strided_slice %86 {offsets = [0, 384], sizes = [2, 128], strides = [1, 1]} : vector<2x512xf32> to vector<2x128xf32>
    %102 = arith.negf %101 : vector<2x128xf32>
    %103 = math.exp %102 : vector<2x128xf32>
    %cst_32 = arith.constant 1.000000e+00 : f32
    %104 = vector.broadcast %cst_32 : f32 to vector<2x128xf32>
    %105 = arith.addf %104, %103 : vector<2x128xf32>
    %106 = arith.divf %104, %105 : vector<2x128xf32>
    %107 = arith.mulf %98, %79 : vector<2x128xf32>
    %108 = arith.mulf %92, %100 : vector<2x128xf32>
    %109 = arith.addf %107, %108 : vector<2x128xf32>
    %110 = math.tanh %109 : vector<2x128xf32>
    %111 = arith.mulf %106, %110 : vector<2x128xf32>
    %c3_i32 = arith.constant 3 : i32
    %112 = arith.index_cast %c3_i32 : i32 to index
    %c0_33 = arith.constant 0 : index
    %c0_34 = arith.constant 0 : index
    %113 = vector.load %arg11[%112, %c0_33, %c0_34] : memref<8x2x512xf32, #tpu.memory_space<vmem>>, vector<1x2x512xf32>
    %114 = vector.shape_cast %113 : vector<1x2x512xf32> to vector<2x512xf32>
    %cst_35 = arith.constant dense<0.000000e+00> : vector<2x512xf32>
    %115 = tpu.matmul %111, %19, %cst_35 {dimension_numbers = #tpu.dot_dimension_numbers<[1], [0], [0], [1], [0, 0, 1, 1], [], []>} : vector<2x128xf32>, vector<128x512xf32>, vector<2x512xf32> -> vector<2x512xf32>
    %116 = arith.addf %114, %115 : vector<2x512xf32>
    %117 = vector.extract_strided_slice %116 {offsets = [0, 0], sizes = [2, 128], strides = [1, 1]} : vector<2x512xf32> to vector<2x128xf32>
    %118 = arith.negf %117 : vector<2x128xf32>
    %119 = math.exp %118 : vector<2x128xf32>
    %cst_36 = arith.constant 1.000000e+00 : f32
    %120 = vector.broadcast %cst_36 : f32 to vector<2x128xf32>
    %121 = arith.addf %120, %119 : vector<2x128xf32>
    %122 = arith.divf %120, %121 : vector<2x128xf32>
    %123 = vector.extract_strided_slice %116 {offsets = [0, 128], sizes = [2, 128], strides = [1, 1]} : vector<2x512xf32> to vector<2x128xf32>
    %124 = arith.negf %123 : vector<2x128xf32>
    %125 = math.exp %124 : vector<2x128xf32>
    %cst_37 = arith.constant 1.000000e+00 : f32
    %126 = vector.broadcast %cst_37 : f32 to vector<2x128xf32>
    %127 = arith.addf %126, %125 : vector<2x128xf32>
    %128 = arith.divf %126, %127 : vector<2x128xf32>
    %129 = vector.extract_strided_slice %116 {offsets = [0, 256], sizes = [2, 128], strides = [1, 1]} : vector<2x512xf32> to vector<2x128xf32>
    %130 = math.tanh %129 : vector<2x128xf32>
    %131 = vector.extract_strided_slice %116 {offsets = [0, 384], sizes = [2, 128], strides = [1, 1]} : vector<2x512xf32> to vector<2x128xf32>
    %132 = arith.negf %131 : vector<2x128xf32>
    %133 = math.exp %132 : vector<2x128xf32>
    %cst_38 = arith.constant 1.000000e+00 : f32
    %134 = vector.broadcast %cst_38 : f32 to vector<2x128xf32>
    %135 = arith.addf %134, %133 : vector<2x128xf32>
    %136 = arith.divf %134, %135 : vector<2x128xf32>
    %137 = arith.mulf %128, %109 : vector<2x128xf32>
    %138 = arith.mulf %122, %130 : vector<2x128xf32>
    %139 = arith.addf %137, %138 : vector<2x128xf32>
    %140 = math.tanh %139 : vector<2x128xf32>
    %141 = arith.mulf %136, %140 : vector<2x128xf32>
    %c4_i32 = arith.constant 4 : i32
    %142 = arith.index_cast %c4_i32 : i32 to index
    %c0_39 = arith.constant 0 : index
    %c0_40 = arith.constant 0 : index
    %143 = vector.load %arg11[%142, %c0_39, %c0_40] : memref<8x2x512xf32, #tpu.memory_space<vmem>>, vector<1x2x512xf32>
    %144 = vector.shape_cast %143 : vector<1x2x512xf32> to vector<2x512xf32>
    %cst_41 = arith.constant dense<0.000000e+00> : vector<2x512xf32>
    %145 = tpu.matmul %141, %19, %cst_41 {dimension_numbers = #tpu.dot_dimension_numbers<[1], [0], [0], [1], [0, 0, 1, 1], [], []>} : vector<2x128xf32>, vector<128x512xf32>, vector<2x512xf32> -> vector<2x512xf32>
    %146 = arith.addf %144, %145 : vector<2x512xf32>
    %147 = vector.extract_strided_slice %146 {offsets = [0, 0], sizes = [2, 128], strides = [1, 1]} : vector<2x512xf32> to vector<2x128xf32>
    %148 = arith.negf %147 : vector<2x128xf32>
    %149 = math.exp %148 : vector<2x128xf32>
    %cst_42 = arith.constant 1.000000e+00 : f32
    %150 = vector.broadcast %cst_42 : f32 to vector<2x128xf32>
    %151 = arith.addf %150, %149 : vector<2x128xf32>
    %152 = arith.divf %150, %151 : vector<2x128xf32>
    %153 = vector.extract_strided_slice %146 {offsets = [0, 128], sizes = [2, 128], strides = [1, 1]} : vector<2x512xf32> to vector<2x128xf32>
    %154 = arith.negf %153 : vector<2x128xf32>
    %155 = math.exp %154 : vector<2x128xf32>
    %cst_43 = arith.constant 1.000000e+00 : f32
    %156 = vector.broadcast %cst_43 : f32 to vector<2x128xf32>
    %157 = arith.addf %156, %155 : vector<2x128xf32>
    %158 = arith.divf %156, %157 : vector<2x128xf32>
    %159 = vector.extract_strided_slice %146 {offsets = [0, 256], sizes = [2, 128], strides = [1, 1]} : vector<2x512xf32> to vector<2x128xf32>
    %160 = math.tanh %159 : vector<2x128xf32>
    %161 = vector.extract_strided_slice %146 {offsets = [0, 384], sizes = [2, 128], strides = [1, 1]} : vector<2x512xf32> to vector<2x128xf32>
    %162 = arith.negf %161 : vector<2x128xf32>
    %163 = math.exp %162 : vector<2x128xf32>
    %cst_44 = arith.constant 1.000000e+00 : f32
    %164 = vector.broadcast %cst_44 : f32 to vector<2x128xf32>
    %165 = arith.addf %164, %163 : vector<2x128xf32>
    %166 = arith.divf %164, %165 : vector<2x128xf32>
    %167 = arith.mulf %158, %139 : vector<2x128xf32>
    %168 = arith.mulf %152, %160 : vector<2x128xf32>
    %169 = arith.addf %167, %168 : vector<2x128xf32>
    %170 = math.tanh %169 : vector<2x128xf32>
    %171 = arith.mulf %166, %170 : vector<2x128xf32>
    %c5_i32 = arith.constant 5 : i32
    %172 = arith.index_cast %c5_i32 : i32 to index
    %c0_45 = arith.constant 0 : index
    %c0_46 = arith.constant 0 : index
    %173 = vector.load %arg11[%172, %c0_45, %c0_46] : memref<8x2x512xf32, #tpu.memory_space<vmem>>, vector<1x2x512xf32>
    %174 = vector.shape_cast %173 : vector<1x2x512xf32> to vector<2x512xf32>
    %cst_47 = arith.constant dense<0.000000e+00> : vector<2x512xf32>
    %175 = tpu.matmul %171, %19, %cst_47 {dimension_numbers = #tpu.dot_dimension_numbers<[1], [0], [0], [1], [0, 0, 1, 1], [], []>} : vector<2x128xf32>, vector<128x512xf32>, vector<2x512xf32> -> vector<2x512xf32>
    %176 = arith.addf %174, %175 : vector<2x512xf32>
    %177 = vector.extract_strided_slice %176 {offsets = [0, 0], sizes = [2, 128], strides = [1, 1]} : vector<2x512xf32> to vector<2x128xf32>
    %178 = arith.negf %177 : vector<2x128xf32>
    %179 = math.exp %178 : vector<2x128xf32>
    %cst_48 = arith.constant 1.000000e+00 : f32
    %180 = vector.broadcast %cst_48 : f32 to vector<2x128xf32>
    %181 = arith.addf %180, %179 : vector<2x128xf32>
    %182 = arith.divf %180, %181 : vector<2x128xf32>
    %183 = vector.extract_strided_slice %176 {offsets = [0, 128], sizes = [2, 128], strides = [1, 1]} : vector<2x512xf32> to vector<2x128xf32>
    %184 = arith.negf %183 : vector<2x128xf32>
    %185 = math.exp %184 : vector<2x128xf32>
    %cst_49 = arith.constant 1.000000e+00 : f32
    %186 = vector.broadcast %cst_49 : f32 to vector<2x128xf32>
    %187 = arith.addf %186, %185 : vector<2x128xf32>
    %188 = arith.divf %186, %187 : vector<2x128xf32>
    %189 = vector.extract_strided_slice %176 {offsets = [0, 256], sizes = [2, 128], strides = [1, 1]} : vector<2x512xf32> to vector<2x128xf32>
    %190 = math.tanh %189 : vector<2x128xf32>
    %191 = vector.extract_strided_slice %176 {offsets = [0, 384], sizes = [2, 128], strides = [1, 1]} : vector<2x512xf32> to vector<2x128xf32>
    %192 = arith.negf %191 : vector<2x128xf32>
    %193 = math.exp %192 : vector<2x128xf32>
    %cst_50 = arith.constant 1.000000e+00 : f32
    %194 = vector.broadcast %cst_50 : f32 to vector<2x128xf32>
    %195 = arith.addf %194, %193 : vector<2x128xf32>
    %196 = arith.divf %194, %195 : vector<2x128xf32>
    %197 = arith.mulf %188, %169 : vector<2x128xf32>
    %198 = arith.mulf %182, %190 : vector<2x128xf32>
    %199 = arith.addf %197, %198 : vector<2x128xf32>
    %200 = math.tanh %199 : vector<2x128xf32>
    %201 = arith.mulf %196, %200 : vector<2x128xf32>
    %c6_i32 = arith.constant 6 : i32
    %202 = arith.index_cast %c6_i32 : i32 to index
    %c0_51 = arith.constant 0 : index
    %c0_52 = arith.constant 0 : index
    %203 = vector.load %arg11[%202, %c0_51, %c0_52] : memref<8x2x512xf32, #tpu.memory_space<vmem>>, vector<1x2x512xf32>
    %204 = vector.shape_cast %203 : vector<1x2x512xf32> to vector<2x512xf32>
    %cst_53 = arith.constant dense<0.000000e+00> : vector<2x512xf32>
    %205 = tpu.matmul %201, %19, %cst_53 {dimension_numbers = #tpu.dot_dimension_numbers<[1], [0], [0], [1], [0, 0, 1, 1], [], []>} : vector<2x128xf32>, vector<128x512xf32>, vector<2x512xf32> -> vector<2x512xf32>
    %206 = arith.addf %204, %205 : vector<2x512xf32>
    %207 = vector.extract_strided_slice %206 {offsets = [0, 0], sizes = [2, 128], strides = [1, 1]} : vector<2x512xf32> to vector<2x128xf32>
    %208 = arith.negf %207 : vector<2x128xf32>
    %209 = math.exp %208 : vector<2x128xf32>
    %cst_54 = arith.constant 1.000000e+00 : f32
    %210 = vector.broadcast %cst_54 : f32 to vector<2x128xf32>
    %211 = arith.addf %210, %209 : vector<2x128xf32>
    %212 = arith.divf %210, %211 : vector<2x128xf32>
    %213 = vector.extract_strided_slice %206 {offsets = [0, 128], sizes = [2, 128], strides = [1, 1]} : vector<2x512xf32> to vector<2x128xf32>
    %214 = arith.negf %213 : vector<2x128xf32>
    %215 = math.exp %214 : vector<2x128xf32>
    %cst_55 = arith.constant 1.000000e+00 : f32
    %216 = vector.broadcast %cst_55 : f32 to vector<2x128xf32>
    %217 = arith.addf %216, %215 : vector<2x128xf32>
    %218 = arith.divf %216, %217 : vector<2x128xf32>
    %219 = vector.extract_strided_slice %206 {offsets = [0, 256], sizes = [2, 128], strides = [1, 1]} : vector<2x512xf32> to vector<2x128xf32>
    %220 = math.tanh %219 : vector<2x128xf32>
    %221 = vector.extract_strided_slice %206 {offsets = [0, 384], sizes = [2, 128], strides = [1, 1]} : vector<2x512xf32> to vector<2x128xf32>
    %222 = arith.negf %221 : vector<2x128xf32>
    %223 = math.exp %222 : vector<2x128xf32>
    %cst_56 = arith.constant 1.000000e+00 : f32
    %224 = vector.broadcast %cst_56 : f32 to vector<2x128xf32>
    %225 = arith.addf %224, %223 : vector<2x128xf32>
    %226 = arith.divf %224, %225 : vector<2x128xf32>
    %227 = arith.mulf %218, %199 : vector<2x128xf32>
    %228 = arith.mulf %212, %220 : vector<2x128xf32>
    %229 = arith.addf %227, %228 : vector<2x128xf32>
    %230 = math.tanh %229 : vector<2x128xf32>
    %231 = arith.mulf %226, %230 : vector<2x128xf32>
    %c7_i32 = arith.constant 7 : i32
    %232 = arith.index_cast %c7_i32 : i32 to index
    %c0_57 = arith.constant 0 : index
    %c0_58 = arith.constant 0 : index
    %233 = vector.load %arg11[%232, %c0_57, %c0_58] : memref<8x2x512xf32, #tpu.memory_space<vmem>>, vector<1x2x512xf32>
    %234 = vector.shape_cast %233 : vector<1x2x512xf32> to vector<2x512xf32>
    %cst_59 = arith.constant dense<0.000000e+00> : vector<2x512xf32>
    %235 = tpu.matmul %231, %19, %cst_59 {dimension_numbers = #tpu.dot_dimension_numbers<[1], [0], [0], [1], [0, 0, 1, 1], [], []>} : vector<2x128xf32>, vector<128x512xf32>, vector<2x512xf32> -> vector<2x512xf32>
    %236 = arith.addf %234, %235 : vector<2x512xf32>
    %237 = vector.extract_strided_slice %236 {offsets = [0, 0], sizes = [2, 128], strides = [1, 1]} : vector<2x512xf32> to vector<2x128xf32>
    %238 = arith.negf %237 : vector<2x128xf32>
    %239 = math.exp %238 : vector<2x128xf32>
    %cst_60 = arith.constant 1.000000e+00 : f32
    %240 = vector.broadcast %cst_60 : f32 to vector<2x128xf32>
    %241 = arith.addf %240, %239 : vector<2x128xf32>
    %242 = arith.divf %240, %241 : vector<2x128xf32>
    %243 = vector.extract_strided_slice %236 {offsets = [0, 128], sizes = [2, 128], strides = [1, 1]} : vector<2x512xf32> to vector<2x128xf32>
    %244 = arith.negf %243 : vector<2x128xf32>
    %245 = math.exp %244 : vector<2x128xf32>
    %cst_61 = arith.constant 1.000000e+00 : f32
    %246 = vector.broadcast %cst_61 : f32 to vector<2x128xf32>
    %247 = arith.addf %246, %245 : vector<2x128xf32>
    %248 = arith.divf %246, %247 : vector<2x128xf32>
    %249 = vector.extract_strided_slice %236 {offsets = [0, 256], sizes = [2, 128], strides = [1, 1]} : vector<2x512xf32> to vector<2x128xf32>
    %250 = math.tanh %249 : vector<2x128xf32>
    %251 = vector.extract_strided_slice %236 {offsets = [0, 384], sizes = [2, 128], strides = [1, 1]} : vector<2x512xf32> to vector<2x128xf32>
    %252 = arith.negf %251 : vector<2x128xf32>
    %253 = math.exp %252 : vector<2x128xf32>
    %cst_62 = arith.constant 1.000000e+00 : f32
    %254 = vector.broadcast %cst_62 : f32 to vector<2x128xf32>
    %255 = arith.addf %254, %253 : vector<2x128xf32>
    %256 = arith.divf %254, %255 : vector<2x128xf32>
    %257 = arith.mulf %248, %229 : vector<2x128xf32>
    %258 = arith.mulf %242, %250 : vector<2x128xf32>
    %259 = arith.addf %257, %258 : vector<2x128xf32>
    %260 = math.tanh %259 : vector<2x128xf32>
    %261 = arith.mulf %256, %260 : vector<2x128xf32>
    %c8_i32 = arith.constant 8 : i32
    %c0_63 = arith.constant 0 : index
    %c0_64 = arith.constant 0 : index
    %262 = vector.load %arg5[%c0_63, %c0_64] : memref<2x512xf32, #tpu.memory_space<vmem>>, vector<2x512xf32>
    %c7 = arith.constant 7 : index
    %c0_65 = arith.constant 0 : index
    %c0_66 = arith.constant 0 : index
    %263 = vector.load %arg0[%c7, %c0_65, %c0_66] : memref<8x2x1xf32, #tpu.memory_space<vmem>>, vector<1x2x1xf32>
    %264 = vector.shape_cast %263 : vector<1x2x1xf32> to vector<2x1xf32>
    %265 = vector.extract_strided_slice %262 {offsets = [0, 0], sizes = [1, 512], strides = [1, 1]} : vector<2x512xf32> to vector<1x512xf32>
    %266 = vector.broadcast %264 : vector<2x1xf32> to vector<2x512xf32>
    %267 = vector.broadcast %265 : vector<1x512xf32> to vector<2x512xf32>
    %268 = arith.mulf %266, %267 : vector<2x512xf32>
    %c7_67 = arith.constant 7 : index
    %c0_68 = arith.constant 0 : index
    %c0_69 = arith.constant 0 : index
    %269 = vector.load %arg1[%c7_67, %c0_68, %c0_69] : memref<8x2x1xf32, #tpu.memory_space<vmem>>, vector<1x2x1xf32>
    %270 = vector.shape_cast %269 : vector<1x2x1xf32> to vector<2x1xf32>
    %271 = vector.extract_strided_slice %262 {offsets = [1, 0], sizes = [1, 512], strides = [1, 1]} : vector<2x512xf32> to vector<1x512xf32>
    %272 = vector.broadcast %270 : vector<2x1xf32> to vector<2x512xf32>
    %273 = vector.broadcast %271 : vector<1x512xf32> to vector<2x512xf32>
    %274 = arith.mulf %272, %273 : vector<2x512xf32>
    %275 = arith.addf %268, %274 : vector<2x512xf32>
    %c0_70 = arith.constant 0 : index
    %c0_71 = arith.constant 0 : index
    %276 = vector.load %arg6[%c0_70, %c0_71] : memref<1x512xf32, #tpu.memory_space<vmem>>, vector<1x512xf32>
    %277 = vector.broadcast %276 : vector<1x512xf32> to vector<2x512xf32>
    %278 = arith.addf %275, %277 : vector<2x512xf32>
    %279 = vector.extract_strided_slice %278 {offsets = [0, 0], sizes = [2, 128], strides = [1, 1]} : vector<2x512xf32> to vector<2x128xf32>
    %280 = arith.negf %279 : vector<2x128xf32>
    %281 = math.exp %280 : vector<2x128xf32>
    %cst_72 = arith.constant 1.000000e+00 : f32
    %282 = vector.broadcast %cst_72 : f32 to vector<2x128xf32>
    %283 = arith.addf %282, %281 : vector<2x128xf32>
    %284 = arith.divf %282, %283 : vector<2x128xf32>
    %285 = vector.extract_strided_slice %278 {offsets = [0, 256], sizes = [2, 128], strides = [1, 1]} : vector<2x512xf32> to vector<2x128xf32>
    %286 = math.tanh %285 : vector<2x128xf32>
    %287 = vector.extract_strided_slice %278 {offsets = [0, 384], sizes = [2, 128], strides = [1, 1]} : vector<2x512xf32> to vector<2x128xf32>
    %288 = arith.negf %287 : vector<2x128xf32>
    %289 = math.exp %288 : vector<2x128xf32>
    %cst_73 = arith.constant 1.000000e+00 : f32
    %290 = vector.broadcast %cst_73 : f32 to vector<2x128xf32>
    %291 = arith.addf %290, %289 : vector<2x128xf32>
    %292 = arith.divf %290, %291 : vector<2x128xf32>
    %293 = arith.mulf %284, %286 : vector<2x128xf32>
    %294 = math.tanh %293 : vector<2x128xf32>
    %295 = arith.mulf %292, %294 : vector<2x128xf32>
    %c0_74 = arith.constant 0 : index
    %c0_75 = arith.constant 0 : index
    %296 = vector.load %arg7[%c0_74, %c0_75] : memref<128x128xf32, #tpu.memory_space<vmem>>, vector<128x128xf32>
    %cst_76 = arith.constant dense<0.000000e+00> : vector<2x128xf32>
    %297 = tpu.matmul %261, %296, %cst_76 {dimension_numbers = #tpu.dot_dimension_numbers<[1], [0], [0], [1], [0, 0, 1, 1], [], []>} : vector<2x128xf32>, vector<128x128xf32>, vector<2x128xf32> -> vector<2x128xf32>
    %c0_77 = arith.constant 0 : index
    %c0_78 = arith.constant 0 : index
    %298 = vector.load %arg8[%c0_77, %c0_78] : memref<128x128xf32, #tpu.memory_space<vmem>>, vector<128x128xf32>
    %cst_79 = arith.constant dense<0.000000e+00> : vector<2x128xf32>
    %299 = tpu.matmul %295, %298, %cst_79 {dimension_numbers = #tpu.dot_dimension_numbers<[1], [0], [0], [1], [0, 0, 1, 1], [], []>} : vector<2x128xf32>, vector<128x128xf32>, vector<2x128xf32> -> vector<2x128xf32>
    %300 = arith.addf %297, %299 : vector<2x128xf32>
    %c0_80 = arith.constant 0 : index
    %c0_81 = arith.constant 0 : index
    %301 = vector.load %arg9[%c0_80, %c0_81] : memref<1x128xf32, #tpu.memory_space<vmem>>, vector<1x128xf32>
    %302 = vector.broadcast %301 : vector<1x128xf32> to vector<2x128xf32>
    %303 = arith.addf %300, %302 : vector<2x128xf32>
    %c0_82 = arith.constant 0 : index
    %c0_83 = arith.constant 0 : index
    %304 = vector.load %arg10[%c0_82, %c0_83] : memref<2x128xf32, #tpu.memory_space<vmem>>, vector<2x128xf32>
    tpu.vector_store %arg10[%c0_82, %c0_83], %303 {strides = array<i32>} : memref<2x128xf32, #tpu.memory_space<vmem>>, vector<2x128xf32>,
    return
  }
}

</mosaic_0001>

<llo_original>
// kernel: my_model_forward.1
$region0: #{my_model_forward.1}
  #allocation0 [shape = 'u32[]', space=smem, size = 0x4, offset = 0x4, fixed_abs, tag = 'smem constant byte address 0x4 - core index']
  #allocation1 [shape = 'u32[144,128]{1,0:T(1,128)}', space=vmem, size = 0x12000, scoped, tag = 'internal scratch']
  #allocation2 [shape = 'f32[8,2,512]{2,1,0:T(2,128)}', space=vmem, size = 0x8000, scoped, tag = 'scratch operand']
  %s0 = inlined_call_operand.vmem [shape: f32[8,2,1], index: 0, kind: input, shape index: {}]
  %s1 = inlined_call_operand.vmem [shape: f32[8,2,1], index: 1, kind: input, shape index: {}]
  %s2 = inlined_call_operand.vmem [shape: f32[2,512], index: 2, kind: input, shape index: {}]
  %s3 = inlined_call_operand.hbm [shape: f32[128,512], index: 3, kind: input, shape index: {}]
  %s4 = inlined_call_operand.vmem [shape: f32[1,512], index: 4, kind: input, shape index: {}]
  %s5 = inlined_call_operand.vmem [shape: f32[2,512], index: 5, kind: input, shape index: {}]
  %s6 = inlined_call_operand.vmem [shape: f32[1,512], index: 6, kind: input, shape index: {}]
  %s7 = inlined_call_operand.hbm [shape: f32[128,128], index: 7, kind: input, shape index: {}]
  %s8 = inlined_call_operand.hbm [shape: f32[128,128], index: 8, kind: input, shape index: {}]
  %s9 = inlined_call_operand.vmem [shape: f32[1,128], index: 9, kind: input, shape index: {}]
  %s10 = inlined_call_operand.hbm [shape: f32[2,128], index: 10, kind: output, shape index: {}]
  %s11 = sld [smem:[#allocation0]]
  $region62: #{my_model_forward.1} parent=0
    _
  %s13 = ssub.s32 1, %s11
  %s14 = scalar_select 0, %s13, %s11
  $region1: #{my_model_forward.1} parent=0
    #allocation3 [shape = 'u8[262144]{0}', space=vmem, size = 0x40000, scoped, tag = 'input window, operand 3, single buffered']
    #allocation4 [shape = 's32[1]{0}', space=sflag, size = 0x4, scoped, tag = 'scoped memory for my_model_forward.1']
    #allocation5 [shape = 's32[1]{0}', space=sflag, size = 0x4, scoped, tag = 'scoped memory for my_model_forward.1']
    #allocation6 [shape = 'u8[65536]{0}', space=vmem, size = 0x10000, scoped, tag = 'input window, operand 7, single buffered']
    #allocation7 [shape = 's32[1]{0}', space=sflag, size = 0x4, scoped, tag = 'scoped memory for my_model_forward.1']
    #allocation8 [shape = 'u8[65536]{0}', space=vmem, size = 0x10000, scoped, tag = 'input window, operand 8, single buffered']
    #allocation9 [shape = 'u8[1024]{0}', space=vmem, size = 0x400, scoped, tag = 'output window, operand 0, single buffered']
    %15 = vsyncpa [#allocation4], 0
    %16 = vsyncpa [#allocation7], 0
    %17 = vsyncpa [#allocation5], 0
    // Predicated region
    $region2: #{my_model_forward.1} parent=1 // pred_check
      _
    $region3: #{my_model_forward.1} parent=1 // pred_check_branch
      %19 = sbr.rel (0) target = $region5
    $region4: #{my_model_forward.1} parent=1 // pred_region
      _
    $region5: #{my_model_forward.1} parent=1 // pred_fallthru
      _
    // Predicated region
    $region6: #{my_model_forward.1} parent=1 // pred_check
      _
    $region7: #{my_model_forward.1} parent=1 // pred_check_branch
      %21 = sbr.rel (0) target = $region9
    $region8: #{my_model_forward.1} parent=1 // pred_region
      _
    $region9: #{my_model_forward.1} parent=1 // pred_fallthru
      _
    // Predicated region
    $region10: #{my_model_forward.1} parent=1 // pred_check
      _
    $region11: #{my_model_forward.1} parent=1 // pred_check_branch
      %23 = sbr.rel (0) target = $region13
    $region12: #{my_model_forward.1} parent=1 // pred_region
      _
    $region13: #{my_model_forward.1} parent=1 // pred_fallthru
      _
    // Predicated region
    $region14: #{my_model_forward.1} parent=1 // pred_check
      _
    $region15: #{my_model_forward.1} parent=1 // pred_check_branch
      %25 = sbr.rel (0) target = $region17
    $region16: #{my_model_forward.1} parent=1 // pred_region
      %s27 = ssub.s32 8192, 8192
      %28 = vsyncadd [#allocation4], %s27
      %s29 = sshll.u32 [#allocation3], 4
      %s30 = int_to_ptr.vmem [resolvable:$true] %s29
      %35 = dma.hbm_to_vmem [thread:$0]  %s3, 8192, %s30, [#allocation4], 512, 512, 32
    $region17: #{my_model_forward.1} parent=1 // pred_fallthru
      _
    // Predicated region
    $region18: #{my_model_forward.1} parent=1 // pred_check
      _
    $region19: #{my_model_forward.1} parent=1 // pred_check_branch
      %37 = sbr.rel (0) target = $region21
    $region20: #{my_model_forward.1} parent=1 // pred_region
      _
    $region21: #{my_model_forward.1} parent=1 // pred_fallthru
      _
    // Predicated region
    $region22: #{my_model_forward.1} parent=1 // pred_check
      _
    $region23: #{my_model_forward.1} parent=1 // pred_check_branch
      %39 = sbr.rel (0) target = $region25
    $region24: #{my_model_forward.1} parent=1 // pred_region
      _
    $region25: #{my_model_forward.1} parent=1 // pred_fallthru
      _
    // Predicated region
    $region26: #{my_model_forward.1} parent=1 // pred_check
      _
    $region27: #{my_model_forward.1} parent=1 // pred_check_branch
      %41 = sbr.rel (0) target = $region29
    $region28: #{my_model_forward.1} parent=1 // pred_region
      _
    $region29: #{my_model_forward.1} parent=1 // pred_fallthru
      _
    // Predicated region
    $region30: #{my_model_forward.1} parent=1 // pred_check
      _
    $region31: #{my_model_forward.1} parent=1 // pred_check_branch
      %43 = sbr.rel (0) target = $region33
    $region32: #{my_model_forward.1} parent=1 // pred_region
      %s45 = ssub.s32 2048, 2048
      %46 = vsyncadd [#allocation7], %s45
      %s47 = sshll.u32 [#allocation6], 4
      %s48 = int_to_ptr.vmem [resolvable:$true] %s47
      %53 = dma.hbm_to_vmem [thread:$0]  %s7, 2048, %s48, [#allocation7], 128, 128, 8
    $region33: #{my_model_forward.1} parent=1 // pred_fallthru
      _
    // Predicated region
    $region34: #{my_model_forward.1} parent=1 // pred_check
      _
    $region35: #{my_model_forward.1} parent=1 // pred_check_branch
      %55 = sbr.rel (0) target = $region37
    $region36: #{my_model_forward.1} parent=1 // pred_region
      %s57 = ssub.s32 2048, 2048
      %58 = vsyncadd [#allocation7], %s57
      %s59 = sshll.u32 [#allocation8], 4
      %s60 = int_to_ptr.vmem [resolvable:$true] %s59
      %65 = dma.hbm_to_vmem [thread:$0]  %s8, 2048, %s60, [#allocation7], 128, 128, 8
    $region37: #{my_model_forward.1} parent=1 // pred_fallthru
      _
    // Predicated region
    $region38: #{my_model_forward.1} parent=1 // pred_check
      _
    $region39: #{my_model_forward.1} parent=1 // pred_check_branch
      %67 = sbr.rel (0) target = $region41
    $region40: #{my_model_forward.1} parent=1 // pred_region
      _
    $region41: #{my_model_forward.1} parent=1 // pred_fallthru
      _
    // Predicated region
    $region42: #{my_model_forward.1} parent=1 // pred_check
      _
    $region43: #{my_model_forward.1} parent=1 // pred_check_branch
      %69 = sbr.rel (0) target = $region45
    $region44: #{my_model_forward.1} parent=1 // pred_region
      %70 = dma.done [#allocation4], 8192
    $region45: #{my_model_forward.1} parent=1 // pred_fallthru
      _
    // Predicated region
    $region46: #{my_model_forward.1} parent=1 // pred_check
      _
    $region47: #{my_model_forward.1} parent=1 // pred_check_branch
      %72 = sbr.rel (0) target = $region49
    $region48: #{my_model_forward.1} parent=1 // pred_region
      %73 = dma.done [#allocation7], 2048
    $region49: #{my_model_forward.1} parent=1 // pred_fallthru
      _
    // Predicated region
    $region50: #{my_model_forward.1} parent=1 // pred_check
      _
    $region51: #{my_model_forward.1} parent=1 // pred_check_branch
      %75 = sbr.rel (0) target = $region53
    $region52: #{my_model_forward.1} parent=1 // pred_region
      %76 = dma.done [#allocation7], 2048
    $region53: #{my_model_forward.1} parent=1 // pred_fallthru
      _
    %v77 = vld [vmem:[%s2] sm:$0xff]
    %v78 = vld [vmem:[%s0] sm:$0x3]
    %v79 = vld [vmem:[%s0 + $0x2] sm:$0x3]
    %v80 = vld [vmem:[%s0 + $0x4] sm:$0x3]
    %v81 = vld [vmem:[%s0 + $0x6] sm:$0x3]
    %v82 = vld [vmem:[%s0 + $0x8] sm:$0x3]
    %v83 = vld [vmem:[%s0 + $0xa] sm:$0x3]
    %v84 = vld [vmem:[%s0 + $0xc] sm:$0x3]
    %v85 = vld [vmem:[%s0 + $0xe] sm:$0x3]
    %87 = vset.pattern.permute.xlu0 0
    %88 = vperm.xlu0 %87, %v78
    %v89 = vpop.permute.xlu0 %88
    %92 = vset.pattern.permute.xlu0 0
    %93 = vperm.xlu0 %92, %v79
    %v94 = vpop.permute.xlu0 %93
    %97 = vset.pattern.permute.xlu0 0
    %98 = vperm.xlu0 %97, %v80
    %v99 = vpop.permute.xlu0 %98
    %102 = vset.pattern.permute.xlu0 0
    %103 = vperm.xlu0 %102, %v81
    %v104 = vpop.permute.xlu0 %103
    %107 = vset.pattern.permute.xlu0 0
    %108 = vperm.xlu0 %107, %v82
    %v109 = vpop.permute.xlu0 %108
    %112 = vset.pattern.permute.xlu0 0
    %113 = vperm.xlu0 %112, %v83
    %v114 = vpop.permute.xlu0 %113
    %117 = vset.pattern.permute.xlu0 0
    %118 = vperm.xlu0 %117, %v84
    %v119 = vpop.permute.xlu0 %118
    %122 = vset.pattern.permute.xlu0 0
    %123 = vperm.xlu0 %122, %v85
    %v124 = vpop.permute.xlu0 %123
    %v127 = vlaneseq
    %v128 = vshrl.u32 %v127, 7
    %v129 = vsub.s32 0, %v128
    %v130 = vrot.slane %v77, %v129
    %v131 = vlaneseq
    %v132 = vshrl.u32 %v131, 7
    %v133 = vsub.s32 2, %v132
    %v134 = vrot.slane %v77, %v133
    %v135 = vlaneseq
    %v136 = vshrl.u32 %v135, 7
    %v137 = vsub.s32 4, %v136
    %v138 = vrot.slane %v77, %v137
    %v139 = vlaneseq
    %v140 = vshrl.u32 %v139, 7
    %v141 = vsub.s32 6, %v140
    %v142 = vrot.slane %v77, %v141
    %v147 = vlaneseq
    %v148 = vshrl.u32 %v147, 7
    %v149 = vsub.s32 0, %v148
    %v150 = vrot.slane %v130, %v149
    %v151 = vlaneseq
    %v152 = vshrl.u32 %v151, 7
    %v153 = vsub.s32 0, %v152
    %v154 = vrot.slane %v134, %v153
    %v155 = vlaneseq
    %v156 = vshrl.u32 %v155, 7
    %v157 = vsub.s32 0, %v156
    %v158 = vrot.slane %v138, %v157
    %v159 = vlaneseq
    %v160 = vshrl.u32 %v159, 7
    %v161 = vsub.s32 0, %v160
    %v162 = vrot.slane %v142, %v161
    %v163 = vmul.f32 %v89, %v150
    %v164 = vmul.f32 %v89, %v154
    %v165 = vmul.f32 %v89, %v158
    %v166 = vmul.f32 %v89, %v162
    %v167 = vmul.f32 %v94, %v150
    %v168 = vmul.f32 %v94, %v154
    %v169 = vmul.f32 %v94, %v158
    %v170 = vmul.f32 %v94, %v162
    %v171 = vmul.f32 %v99, %v150
    %v172 = vmul.f32 %v99, %v154
    %v173 = vmul.f32 %v99, %v158
    %v174 = vmul.f32 %v99, %v162
    %v175 = vmul.f32 %v104, %v150
    %v176 = vmul.f32 %v104, %v154
    %v177 = vmul.f32 %v104, %v158
    %v178 = vmul.f32 %v104, %v162
    %v179 = vmul.f32 %v109, %v150
    %v180 = vmul.f32 %v109, %v154
    %v181 = vmul.f32 %v109, %v158
    %v182 = vmul.f32 %v109, %v162
    %v183 = vmul.f32 %v114, %v150
    %v184 = vmul.f32 %v114, %v154
    %v185 = vmul.f32 %v114, %v158
    %v186 = vmul.f32 %v114, %v162
    %v187 = vmul.f32 %v119, %v150
    %v188 = vmul.f32 %v119, %v154
    %v189 = vmul.f32 %v119, %v158
    %v190 = vmul.f32 %v119, %v162
    %v191 = vmul.f32 %v124, %v150
    %v192 = vmul.f32 %v124, %v154
    %v193 = vmul.f32 %v124, %v158
    %v194 = vmul.f32 %v124, %v162
    %v195 = vld [vmem:[%s1] sm:$0x3]
    %v196 = vld [vmem:[%s1 + $0x2] sm:$0x3]
    %v197 = vld [vmem:[%s1 + $0x4] sm:$0x3]
    %v198 = vld [vmem:[%s1 + $0x6] sm:$0x3]
    %v199 = vld [vmem:[%s1 + $0x8] sm:$0x3]
    %v200 = vld [vmem:[%s1 + $0xa] sm:$0x3]
    %v201 = vld [vmem:[%s1 + $0xc] sm:$0x3]
    %v202 = vld [vmem:[%s1 + $0xe] sm:$0x3]
    %204 = vset.pattern.permute.xlu0 0
    %205 = vperm.xlu0 %204, %v195
    %v206 = vpop.permute.xlu0 %205
    %209 = vset.pattern.permute.xlu0 0
    %210 = vperm.xlu0 %209, %v196
    %v211 = vpop.permute.xlu0 %210
    %214 = vset.pattern.permute.xlu0 0
    %215 = vperm.xlu0 %214, %v197
    %v216 = vpop.permute.xlu0 %215
    %219 = vset.pattern.permute.xlu0 0
    %220 = vperm.xlu0 %219, %v198
    %v221 = vpop.permute.xlu0 %220
    %224 = vset.pattern.permute.xlu0 0
    %225 = vperm.xlu0 %224, %v199
    %v226 = vpop.permute.xlu0 %225
    %229 = vset.pattern.permute.xlu0 0
    %230 = vperm.xlu0 %229, %v200
    %v231 = vpop.permute.xlu0 %230
    %234 = vset.pattern.permute.xlu0 0
    %235 = vperm.xlu0 %234, %v201
    %v236 = vpop.permute.xlu0 %235
    %239 = vset.pattern.permute.xlu0 0
    %240 = vperm.xlu0 %239, %v202
    %v241 = vpop.permute.xlu0 %240
    %v243 = vlaneseq
    %v244 = vshrl.u32 %v243, 7
    %v245 = vsub.s32 1, %v244
    %v246 = vrot.slane %v77, %v245
    %v247 = vlaneseq
    %v248 = vshrl.u32 %v247, 7
    %v249 = vsub.s32 3, %v248
    %v250 = vrot.slane %v77, %v249
    %v251 = vlaneseq
    %v252 = vshrl.u32 %v251, 7
    %v253 = vsub.s32 5, %v252
    %v254 = vrot.slane %v77, %v253
    %v255 = vlaneseq
    %v256 = vshrl.u32 %v255, 7
    %v257 = vsub.s32 7, %v256
    %v258 = vrot.slane %v77, %v257
    %v263 = vlaneseq
    %v264 = vshrl.u32 %v263, 7
    %v265 = vsub.s32 1, %v264
    %v266 = vrot.slane %v246, %v265
    %v267 = vlaneseq
    %v268 = vshrl.u32 %v267, 7
    %v269 = vsub.s32 1, %v268
    %v270 = vrot.slane %v250, %v269
    %v271 = vlaneseq
    %v272 = vshrl.u32 %v271, 7
    %v273 = vsub.s32 1, %v272
    %v274 = vrot.slane %v254, %v273
    %v275 = vlaneseq
    %v276 = vshrl.u32 %v275, 7
    %v277 = vsub.s32 1, %v276
    %v278 = vrot.slane %v258, %v277
    %v279 = vmul.f32 %v206, %v266
    %v280 = vmul.f32 %v206, %v270
    %v281 = vmul.f32 %v206, %v274
    %v282 = vmul.f32 %v206, %v278
    %v283 = vmul.f32 %v211, %v266
    %v284 = vmul.f32 %v211, %v270
    %v285 = vmul.f32 %v211, %v274
    %v286 = vmul.f32 %v211, %v278
    %v287 = vmul.f32 %v216, %v266
    %v288 = vmul.f32 %v216, %v270
    %v289 = vmul.f32 %v216, %v274
    %v290 = vmul.f32 %v216, %v278
    %v291 = vmul.f32 %v221, %v266
    %v292 = vmul.f32 %v221, %v270
    %v293 = vmul.f32 %v221, %v274
    %v294 = vmul.f32 %v221, %v278
    %v295 = vmul.f32 %v226, %v266
    %v296 = vmul.f32 %v226, %v270
    %v297 = vmul.f32 %v226, %v274
    %v298 = vmul.f32 %v226, %v278
    %v299 = vmul.f32 %v231, %v266
    %v300 = vmul.f32 %v231, %v270
    %v301 = vmul.f32 %v231, %v274
    %v302 = vmul.f32 %v231, %v278
    %v303 = vmul.f32 %v236, %v266
    %v304 = vmul.f32 %v236, %v270
    %v305 = vmul.f32 %v236, %v274
    %v306 = vmul.f32 %v236, %v278
    %v307 = vmul.f32 %v241, %v266
    %v308 = vmul.f32 %v241, %v270
    %v309 = vmul.f32 %v241, %v274
    %v310 = vmul.f32 %v241, %v278
    %v311 = vadd.f32 %v163, %v279
    %v312 = vadd.f32 %v164, %v280
    %v313 = vadd.f32 %v165, %v281
    %v314 = vadd.f32 %v166, %v282
    %v315 = vadd.f32 %v167, %v283
    %v316 = vadd.f32 %v168, %v284
    %v317 = vadd.f32 %v169, %v285
    %v318 = vadd.f32 %v170, %v286
    %v319 = vadd.f32 %v171, %v287
    %v320 = vadd.f32 %v172, %v288
    %v321 = vadd.f32 %v173, %v289
    %v322 = vadd.f32 %v174, %v290
    %v323 = vadd.f32 %v175, %v291
    %v324 = vadd.f32 %v176, %v292
    %v325 = vadd.f32 %v177, %v293
    %v326 = vadd.f32 %v178, %v294
    %v327 = vadd.f32 %v179, %v295
    %v328 = vadd.f32 %v180, %v296
    %v329 = vadd.f32 %v181, %v297
    %v330 = vadd.f32 %v182, %v298
    %v331 = vadd.f32 %v183, %v299
    %v332 = vadd.f32 %v184, %v300
    %v333 = vadd.f32 %v185, %v301
    %v334 = vadd.f32 %v186, %v302
    %v335 = vadd.f32 %v187, %v303
    %v336 = vadd.f32 %v188, %v304
    %v337 = vadd.f32 %v189, %v305
    %v338 = vadd.f32 %v190, %v306
    %v339 = vadd.f32 %v191, %v307
    %v340 = vadd.f32 %v192, %v308
    %v341 = vadd.f32 %v193, %v309
    %v342 = vadd.f32 %v194, %v310
    %v343 = vld [vmem:[%s4] sm:$0xf]
    %v345 = vlaneseq
    %v346 = vshrl.u32 %v345, 7
    %v347 = vsub.s32 0, %v346
    %v348 = vrot.slane %v343, %v347
    %v349 = vlaneseq
    %v350 = vshrl.u32 %v349, 7
    %v351 = vsub.s32 1, %v350
    %v352 = vrot.slane %v343, %v351
    %v353 = vlaneseq
    %v354 = vshrl.u32 %v353, 7
    %v355 = vsub.s32 2, %v354
    %v356 = vrot.slane %v343, %v355
    %v357 = vlaneseq
    %v358 = vshrl.u32 %v357, 7
    %v359 = vsub.s32 3, %v358
    %v360 = vrot.slane %v343, %v359
    %v365 = vadd.f32 %v311, %v348
    %v366 = vadd.f32 %v312, %v352
    %v367 = vadd.f32 %v313, %v356
    %v368 = vadd.f32 %v314, %v360
    %v369 = vadd.f32 %v315, %v348
    %v370 = vadd.f32 %v316, %v352
    %v371 = vadd.f32 %v317, %v356
    %v372 = vadd.f32 %v318, %v360
    %v373 = vadd.f32 %v319, %v348
    %v374 = vadd.f32 %v320, %v352
    %v375 = vadd.f32 %v321, %v356
    %v376 = vadd.f32 %v322, %v360
    %v377 = vadd.f32 %v323, %v348
    %v378 = vadd.f32 %v324, %v352
    %v379 = vadd.f32 %v325, %v356
    %v380 = vadd.f32 %v326, %v360
    %v381 = vadd.f32 %v327, %v348
    %v382 = vadd.f32 %v328, %v352
    %v383 = vadd.f32 %v329, %v356
    %v384 = vadd.f32 %v330, %v360
    %v385 = vadd.f32 %v331, %v348
    %v386 = vadd.f32 %v332, %v352
    %v387 = vadd.f32 %v333, %v356
    %v388 = vadd.f32 %v334, %v360
    %v389 = vadd.f32 %v335, %v348
    %v390 = vadd.f32 %v336, %v352
    %v391 = vadd.f32 %v337, %v356
    %v392 = vadd.f32 %v338, %v360
    %v393 = vadd.f32 %v339, %v348
    %v394 = vadd.f32 %v340, %v352
    %v395 = vadd.f32 %v341, %v356
    %v396 = vadd.f32 %v342, %v360
    %v429 = vcombine.low %v365, %v366
    %v430 = vcombine.low %v367, %v368
    %v432 = vunpack.c.l.s4 1983009808
    %v433 = vunpack.c.0.s8 %v432
    %v434 = vlaneseq
    %v435 = vshrl.u32 %v434, 7
    %v436 = vsub.s32 %v433, %v435
    %v437 = vrot.slane %v429, %v436
    %v439 = vunpack.c.l.s4 1983009808
    %v440 = vunpack.c.0.s8 %v439
    %v441 = vlaneseq
    %v442 = vshrl.u32 %v441, 7
    %v443 = vsub.s32 %v440, %v442
    %v444 = vrot.slane %v430, %v443
    %v445 = vcombine.low %v437, %v444
    %v446 = vcombine.low %v369, %v370
    %v447 = vcombine.low %v371, %v372
    %v449 = vunpack.c.l.s4 1983009808
    %v450 = vunpack.c.0.s8 %v449
    %v451 = vlaneseq
    %v452 = vshrl.u32 %v451, 7
    %v453 = vsub.s32 %v450, %v452
    %v454 = vrot.slane %v446, %v453
    %v456 = vunpack.c.l.s4 1983009808
    %v457 = vunpack.c.0.s8 %v456
    %v458 = vlaneseq
    %v459 = vshrl.u32 %v458, 7
    %v460 = vsub.s32 %v457, %v459
    %v461 = vrot.slane %v447, %v460
    %v462 = vcombine.low %v454, %v461
    %v463 = vcombine.low %v373, %v374
    %v464 = vcombine.low %v375, %v376
    %v466 = vunpack.c.l.s4 1983009808
    %v467 = vunpack.c.0.s8 %v466
    %v468 = vlaneseq
    %v469 = vshrl.u32 %v468, 7
    %v470 = vsub.s32 %v467, %v469
    %v471 = vrot.slane %v463, %v470
    %v473 = vunpack.c.l.s4 1983009808
    %v474 = vunpack.c.0.s8 %v473
    %v475 = vlaneseq
    %v476 = vshrl.u32 %v475, 7
    %v477 = vsub.s32 %v474, %v476
    %v478 = vrot.slane %v464, %v477
    %v479 = vcombine.low %v471, %v478
    %v480 = vcombine.low %v377, %v378
    %v481 = vcombine.low %v379, %v380
    %v483 = vunpack.c.l.s4 1983009808
    %v484 = vunpack.c.0.s8 %v483
    %v485 = vlaneseq
    %v486 = vshrl.u32 %v485, 7
    %v487 = vsub.s32 %v484, %v486
    %v488 = vrot.slane %v480, %v487
    %v490 = vunpack.c.l.s4 1983009808
    %v491 = vunpack.c.0.s8 %v490
    %v492 = vlaneseq
    %v493 = vshrl.u32 %v492, 7
    %v494 = vsub.s32 %v491, %v493
    %v495 = vrot.slane %v481, %v494
    %v496 = vcombine.low %v488, %v495
    %v497 = vcombine.low %v381, %v382
    %v498 = vcombine.low %v383, %v384
    %v500 = vunpack.c.l.s4 1983009808
    %v501 = vunpack.c.0.s8 %v500
    %v502 = vlaneseq
    %v503 = vshrl.u32 %v502, 7
    %v504 = vsub.s32 %v501, %v503
    %v505 = vrot.slane %v497, %v504
    %v507 = vunpack.c.l.s4 1983009808
    %v508 = vunpack.c.0.s8 %v507
    %v509 = vlaneseq
    %v510 = vshrl.u32 %v509, 7
    %v511 = vsub.s32 %v508, %v510
    %v512 = vrot.slane %v498, %v511
    %v513 = vcombine.low %v505, %v512
    %v514 = vcombine.low %v385, %v386
    %v515 = vcombine.low %v387, %v388
    %v517 = vunpack.c.l.s4 1983009808
    %v518 = vunpack.c.0.s8 %v517
    %v519 = vlaneseq
    %v520 = vshrl.u32 %v519, 7
    %v521 = vsub.s32 %v518, %v520
    %v522 = vrot.slane %v514, %v521
    %v524 = vunpack.c.l.s4 1983009808
    %v525 = vunpack.c.0.s8 %v524
    %v526 = vlaneseq
    %v527 = vshrl.u32 %v526, 7
    %v528 = vsub.s32 %v525, %v527
    %v529 = vrot.slane %v515, %v528
    %v530 = vcombine.low %v522, %v529
    %v531 = vcombine.low %v389, %v390
    %v532 = vcombine.low %v391, %v392
    %v534 = vunpack.c.l.s4 1983009808
    %v535 = vunpack.c.0.s8 %v534
    %v536 = vlaneseq
    %v537 = vshrl.u32 %v536, 7
    %v538 = vsub.s32 %v535, %v537
    %v539 = vrot.slane %v531, %v538
    %v541 = vunpack.c.l.s4 1983009808
    %v542 = vunpack.c.0.s8 %v541
    %v543 = vlaneseq
    %v544 = vshrl.u32 %v543, 7
    %v545 = vsub.s32 %v542, %v544
    %v546 = vrot.slane %v532, %v545
    %v547 = vcombine.low %v539, %v546
    %v548 = vcombine.low %v393, %v394
    %v549 = vcombine.low %v395, %v396
    %v551 = vunpack.c.l.s4 1983009808
    %v552 = vunpack.c.0.s8 %v551
    %v553 = vlaneseq
    %v554 = vshrl.u32 %v553, 7
    %v555 = vsub.s32 %v552, %v554
    %v556 = vrot.slane %v548, %v555
    %v558 = vunpack.c.l.s4 1983009808
    %v559 = vunpack.c.0.s8 %v558
    %v560 = vlaneseq
    %v561 = vshrl.u32 %v560, 7
    %v562 = vsub.s32 %v559, %v561
    %v563 = vrot.slane %v549, %v562
    %v564 = vcombine.low %v556, %v563
    %573 = vst [vmem:[#allocation2] sm:$0xff] %v445
    %574 = vst [vmem:[#allocation2 + $0x8] sm:$0xff] %v462
    %575 = vst [vmem:[#allocation2 + $0x10] sm:$0xff] %v479
    %576 = vst [vmem:[#allocation2 + $0x18] sm:$0xff] %v496
    %577 = vst [vmem:[#allocation2 + $0x20] sm:$0xff] %v513
    %578 = vst [vmem:[#allocation2 + $0x28] sm:$0xff] %v530
    %579 = vst [vmem:[#allocation2 + $0x30] sm:$0xff] %v547
    %580 = vst [vmem:[#allocation2 + $0x38] sm:$0xff] %v564
    %v581 = vld [vmem:[#allocation3] sm:$0xff]
    %v582 = vld [vmem:[#allocation3 + $0x8] sm:$0xff]
    %v583 = vld [vmem:[#allocation3 + $0x10] sm:$0xff]
    %v584 = vld [vmem:[#allocation3 + $0x18] sm:$0xff]
    %v585 = vld [vmem:[#allocation3 + $0x20] sm:$0xff]
    %v586 = vld [vmem:[#allocation3 + $0x28] sm:$0xff]
    %v587 = vld [vmem:[#allocation3 + $0x30] sm:$0xff]
    %v588 = vld [vmem:[#allocation3 + $0x38] sm:$0xff]
    %v589 = vld [vmem:[#allocation3 + $0x40] sm:$0xff]
    %v590 = vld [vmem:[#allocation3 + $0x48] sm:$0xff]
    %v591 = vld [vmem:[#allocation3 + $0x50] sm:$0xff]
    %v592 = vld [vmem:[#allocation3 + $0x58] sm:$0xff]
    %v593 = vld [vmem:[#allocation3 + $0x60] sm:$0xff]
    %v594 = vld [vmem:[#allocation3 + $0x68] sm:$0xff]
    %v595 = vld [vmem:[#allocation3 + $0x70] sm:$0xff]
    %v596 = vld [vmem:[#allocation3 + $0x78] sm:$0xff]
    %v597 = vld [vmem:[#allocation3 + $0x80] sm:$0xff]
    %v598 = vld [vmem:[#allocation3 + $0x88] sm:$0xff]
    %v599 = vld [vmem:[#allocation3 + $0x90] sm:$0xff]
    %v600 = vld [vmem:[#allocation3 + $0x98] sm:$0xff]
    %v601 = vld [vmem:[#allocation3 + $0xa0] sm:$0xff]
    %v602 = vld [vmem:[#allocation3 + $0xa8] sm:$0xff]
    %v603 = vld [vmem:[#allocation3 + $0xb0] sm:$0xff]
    %v604 = vld [vmem:[#allocation3 + $0xb8] sm:$0xff]
    %v605 = vld [vmem:[#allocation3 + $0xc0] sm:$0xff]
    %v606 = vld [vmem:[#allocation3 + $0xc8] sm:$0xff]
    %v607 = vld [vmem:[#allocation3 + $0xd0] sm:$0xff]
    %v608 = vld [vmem:[#allocation3 + $0xd8] sm:$0xff]
    %v609 = vld [vmem:[#allocation3 + $0xe0] sm:$0xff]
    %v610 = vld [vmem:[#allocation3 + $0xe8] sm:$0xff]
    %v611 = vld [vmem:[#allocation3 + $0xf0] sm:$0xff]
    %v612 = vld [vmem:[#allocation3 + $0xf8] sm:$0xff]
    %v613 = vld [vmem:[#allocation3 + $0x100] sm:$0xff]
    %v614 = vld [vmem:[#allocation3 + $0x108] sm:$0xff]
    %v615 = vld [vmem:[#allocation3 + $0x110] sm:$0xff]
    %v616 = vld [vmem:[#allocation3 + $0x118] sm:$0xff]
    %v617 = vld [vmem:[#allocation3 + $0x120] sm:$0xff]
    %v618 = vld [vmem:[#allocation3 + $0x128] sm:$0xff]
    %v619 = vld [vmem:[#allocation3 + $0x130] sm:$0xff]
    %v620 = vld [vmem:[#allocation3 + $0x138] sm:$0xff]
    %v621 = vld [vmem:[#allocation3 + $0x140] sm:$0xff]
    %v622 = vld [vmem:[#allocation3 + $0x148] sm:$0xff]
    %v623 = vld [vmem:[#allocation3 + $0x150] sm:$0xff]
    %v624 = vld [vmem:[#allocation3 + $0x158] sm:$0xff]
    %v625 = vld [vmem:[#allocation3 + $0x160] sm:$0xff]
    %v626 = vld [vmem:[#allocation3 + $0x168] sm:$0xff]
    %v627 = vld [vmem:[#allocation3 + $0x170] sm:$0xff]
    %v628 = vld [vmem:[#allocation3 + $0x178] sm:$0xff]
    %v629 = vld [vmem:[#allocation3 + $0x180] sm:$0xff]
    %v630 = vld [vmem:[#allocation3 + $0x188] sm:$0xff]
    %v631 = vld [vmem:[#allocation3 + $0x190] sm:$0xff]
    %v632 = vld [vmem:[#allocation3 + $0x198] sm:$0xff]
    %v633 = vld [vmem:[#allocation3 + $0x1a0] sm:$0xff]
    %v634 = vld [vmem:[#allocation3 + $0x1a8] sm:$0xff]
    %v635 = vld [vmem:[#allocation3 + $0x1b0] sm:$0xff]
    %v636 = vld [vmem:[#allocation3 + $0x1b8] sm:$0xff]
    %v637 = vld [vmem:[#allocation3 + $0x1c0] sm:$0xff]
    %v638 = vld [vmem:[#allocation3 + $0x1c8] sm:$0xff]
    %v639 = vld [vmem:[#allocation3 + $0x1d0] sm:$0xff]
    %v640 = vld [vmem:[#allocation3 + $0x1d8] sm:$0xff]
    %v641 = vld [vmem:[#allocation3 + $0x1e0] sm:$0xff]
    %v642 = vld [vmem:[#allocation3 + $0x1e8] sm:$0xff]
    %v643 = vld [vmem:[#allocation3 + $0x1f0] sm:$0xff]
    %v644 = vld [vmem:[#allocation3 + $0x1f8] sm:$0xff]
    %v645 = vld [vmem:[#allocation2] sm:$0xff]
    %646 = vmatprep.subr.mxu0 %v582
    %647 = vmatpush1.msra.mxu0 %v581
    %648 = vmatprep.subr.mxu0 %v586
    %649 = vmatpush1.msra.mxu0 %v585
    %650 = vmatprep.subr.mxu0 %v590
    %651 = vmatpush1.msra.mxu0 %v589
    %652 = vmatprep.subr.mxu0 %v594
    %653 = vmatpush1.msra.mxu0 %v593
    %654 = vmatprep.subr.mxu0 %v598
    %655 = vmatpush1.msra.mxu0 %v597
    %656 = vmatprep.subr.mxu0 %v602
    %657 = vmatpush1.msra.mxu0 %v601
    %658 = vmatprep.subr.mxu0 %v606
    %659 = vmatpush1.msra.mxu0 %v605
    %660 = vmatprep.subr.mxu0 %v610
    %661 = vmatpush1.msra.mxu0 %v609
    %662 = vmatprep.subr.mxu0 %v614
    %663 = vmatpush1.msra.mxu0 %v613
    %664 = vmatprep.subr.mxu0 %v618
    %665 = vmatpush1.msra.mxu0 %v617
    %666 = vmatprep.subr.mxu0 %v622
    %667 = vmatpush1.msra.mxu0 %v621
    %668 = vmatprep.subr.mxu0 %v626
    %669 = vmatpush1.msra.mxu0 %v625
    %670 = vmatprep.subr.mxu0 %v630
    %671 = vmatpush1.msra.mxu0 %v629
    %672 = vmatprep.subr.mxu0 %v634
    %673 = vmatpush1.msra.mxu0 %v633
    %674 = vmatprep.subr.mxu0 %v638
    %675 = vmatpush1.msra.mxu0 %v637
    %676 = vmatprep.subr.mxu0 %v642
    %677 = vmatpush1.msra.mxu0 %v641
    %678 = vmatprep.subr.mxu0 0.0
    %679 = vmatpush1.msra.mxu0 0.0
    %680 = vmatprep.subr.mxu0 0.0
    %681 = vmatpush1.msra.mxu0 0.0
    %682 = vmatprep.subr.mxu0 0.0
    %683 = vmatpush1.msra.mxu0 0.0
    %684 = vmatprep.subr.mxu0 0.0
    %685 = vmatpush1.msra.mxu0 0.0
    %686 = vmatprep.subr.mxu0 0.0
    %687 = vmatpush1.msra.mxu0 0.0
    %688 = vmatprep.subr.mxu0 0.0
    %689 = vmatpush1.msra.mxu0 0.0
    %690 = vmatprep.subr.mxu0 0.0
    %691 = vmatpush1.msra.mxu0 0.0
    %692 = vmatprep.subr.mxu0 0.0
    %693 = vmatpush1.msra.mxu0 0.0
    %694 = vmatprep.subr.mxu0 0.0
    %695 = vmatpush1.msra.mxu0 0.0
    %696 = vmatprep.subr.mxu0 0.0
    %697 = vmatpush1.msra.mxu0 0.0
    %698 = vmatprep.subr.mxu0 0.0
    %699 = vmatpush1.msra.mxu0 0.0
    %700 = vmatprep.subr.mxu0 0.0
    %701 = vmatpush1.msra.mxu0 0.0
    %702 = vmatprep.subr.mxu0 0.0
    %703 = vmatpush1.msra.mxu0 0.0
    %704 = vmatprep.subr.mxu0 0.0
    %705 = vmatpush1.msra.mxu0 0.0
    %706 = vmatprep.subr.mxu0 0.0
    %707 = vmatpush1.msra.mxu0 0.0
    %708 = vmatprep.subr.mxu0 0.0
    %709 = vmatpush1.msra.mxu0 0.0
    %710 = vmatprep.mubr.f32.mxu0 0.0
    %711 = vmatmul.mubr.f32.gmra.mrb[0].mxu0 0.0
    %v712 = vpop.f32.mrb[0].mxu0
    %v713 = vadd.f32 0.0, %v712
    %v714 = vpop.f32.mrb[0].mxu0
    %v715 = vadd.f32 0.0, %v714
    %716 = vdwg.mxu0
    %717 = vmatprep.subr.mxu0 %v584
    %718 = vmatpush1.msra.mxu0 %v583
    %719 = vmatprep.subr.mxu0 %v588
    %720 = vmatpush1.msra.mxu0 %v587
    %721 = vmatprep.subr.mxu0 %v592
    %722 = vmatpush1.msra.mxu0 %v591
    %723 = vmatprep.subr.mxu0 %v596
    %724 = vmatpush1.msra.mxu0 %v595
    %725 = vmatprep.subr.mxu0 %v600
    %726 = vmatpush1.msra.mxu0 %v599
    %727 = vmatprep.subr.mxu0 %v604
    %728 = vmatpush1.msra.mxu0 %v603
    %729 = vmatprep.subr.mxu0 %v608
    %730 = vmatpush1.msra.mxu0 %v607
    %731 = vmatprep.subr.mxu0 %v612
    %732 = vmatpush1.msra.mxu0 %v611
    %733 = vmatprep.subr.mxu0 %v616
    %734 = vmatpush1.msra.mxu0 %v615
    %735 = vmatprep.subr.mxu0 %v620
    %736 = vmatpush1.msra.mxu0 %v619
    %737 = vmatprep.subr.mxu0 %v624
    %738 = vmatpush1.msra.mxu0 %v623
    %739 = vmatprep.subr.mxu0 %v628
    %740 = vmatpush1.msra.mxu0 %v627
    %741 = vmatprep.subr.mxu0 %v632
    %742 = vmatpush1.msra.mxu0 %v631
    %743 = vmatprep.subr.mxu0 %v636
    %744 = vmatpush1.msra.mxu0 %v635
    %745 = vmatprep.subr.mxu0 %v640
    %746 = vmatpush1.msra.mxu0 %v639
    %747 = vmatprep.subr.mxu0 %v644
    %748 = vmatpush1.msra.mxu0 %v643
    %749 = vmatprep.subr.mxu0 0.0
    %750 = vmatpush1.msra.mxu0 0.0
    %751 = vmatprep.subr.mxu0 0.0
    %752 = vmatpush1.msra.mxu0 0.0
    %753 = vmatprep.subr.mxu0 0.0
    %754 = vmatpush1.msra.mxu0 0.0
    %755 = vmatprep.subr.mxu0 0.0
    %756 = vmatpush1.msra.mxu0 0.0
    %757 = vmatprep.subr.mxu0 0.0
    %758 = vmatpush1.msra.mxu0 0.0
    %759 = vmatprep.subr.mxu0 0.0
    %760 = vmatpush1.msra.mxu0 0.0
    %761 = vmatprep.subr.mxu0 0.0
    %762 = vmatpush1.msra.mxu0 0.0
    %763 = vmatprep.subr.mxu0 0.0
    %764 = vmatpush1.msra.mxu0 0.0
    %765 = vmatprep.subr.mxu0 0.0
    %766 = vmatpush1.msra.mxu0 0.0
    %767 = vmatprep.subr.mxu0 0.0
    %768 = vmatpush1.msra.mxu0 0.0
    %769 = vmatprep.subr.mxu0 0.0
    %770 = vmatpush1.msra.mxu0 0.0
    %771 = vmatprep.subr.mxu0 0.0
    %772 = vmatpush1.msra.mxu0 0.0
    %773 = vmatprep.subr.mxu0 0.0
    %774 = vmatpush1.msra.mxu0 0.0
    %775 = vmatprep.subr.mxu0 0.0
    %776 = vmatpush1.msra.mxu0 0.0
    %777 = vmatprep.subr.mxu0 0.0
    %778 = vmatpush1.msra.mxu0 0.0
    %779 = vmatprep.subr.mxu0 0.0
    %780 = vmatpush1.msra.mxu0 0.0
    %781 = vmatprep.mubr.f32.mxu0 0.0
    %782 = vmatmul.mubr.f32.gmra.mrb[0].mxu0 0.0
    %v783 = vpop.f32.mrb[0].mxu0
    %v784 = vadd.f32 0.0, %v783
    %v785 = vpop.f32.mrb[0].mxu0
    %v786 = vadd.f32 0.0, %v785
    %787 = vdwg.mxu0
    %v792 = vcombine.low %v713, %v715
    %v793 = vcombine.low %v784, %v786
    %v795 = vunpack.c.l.s4 1983009808
    %v796 = vunpack.c.0.s8 %v795
    %v797 = vlaneseq
    %v798 = vshrl.u32 %v797, 7
    %v799 = vsub.s32 %v796, %v798
    %v800 = vrot.slane %v792, %v799
    %v802 = vunpack.c.l.s4 1983009808
    %v803 = vunpack.c.0.s8 %v802
    %v804 = vlaneseq
    %v805 = vshrl.u32 %v804, 7
    %v806 = vsub.s32 %v803, %v805
    %v807 = vrot.slane %v793, %v806
    %v808 = vcombine.low %v800, %v807
    %v810 = vadd.f32 %v645, %v808
    %v811 = vxor.u32 %v810, 2147483648
    %v812 = vmul.f32 %v811, 1.442695
    %v813 = vpow.pop %v812
    %v814 = vadd.f32 %v813, 1.0
    %v815 = vrcp.pop %v814
    %v816 = vmul.f32 1.0, %v815
    %v818 = vrot.slane %v810, 2
    %v820 = vxor.u32 %v818, 2147483648
    %v821 = vmul.f32 %v820, 1.442695
    %v822 = vpow.pop %v821
    %v823 = vadd.f32 %v822, 1.0
    %v824 = vrcp.pop %v823
    %v825 = vmul.f32 1.0, %v824
    %v826 = vrot.slane %v810, 4
    %v828 = vtanh.pop %v826
    %v829 = vrot.slane %v810, 6
    %v831 = vxor.u32 %v829, 2147483648
    %v832 = vmul.f32 %v831, 1.442695
    %v833 = vpow.pop %v832
    %v834 = vadd.f32 %v833, 1.0
    %v835 = vrcp.pop %v834
    %v836 = vmul.f32 1.0, %v835
    %v837 = vmul.f32 %v825, 0.0
    %v838 = vmul.f32 %v816, %v828
    %v839 = vadd.f32 %v837, %v838
    %v840 = vtanh.pop %v839
    %v841 = vmul.f32 %v836, %v840
    %s842 = scalar_lea.vmem [#allocation2], 8
    %v843 = vld [vmem:[%s842] sm:$0xff]
    %844 = vmatprep.subr.mxu0 %v582
    %845 = vmatpush1.msra.mxu0 %v581
    %846 = vmatprep.subr.mxu0 %v586
    %847 = vmatpush1.msra.mxu0 %v585
    %848 = vmatprep.subr.mxu0 %v590
    %849 = vmatpush1.msra.mxu0 %v589
    %850 = vmatprep.subr.mxu0 %v594
    %851 = vmatpush1.msra.mxu0 %v593
    %852 = vmatprep.subr.mxu0 %v598
    %853 = vmatpush1.msra.mxu0 %v597
    %854 = vmatprep.subr.mxu0 %v602
    %855 = vmatpush1.msra.mxu0 %v601
    %856 = vmatprep.subr.mxu0 %v606
    %857 = vmatpush1.msra.mxu0 %v605
    %858 = vmatprep.subr.mxu0 %v610
    %859 = vmatpush1.msra.mxu0 %v609
    %860 = vmatprep.subr.mxu0 %v614
    %861 = vmatpush1.msra.mxu0 %v613
    %862 = vmatprep.subr.mxu0 %v618
    %863 = vmatpush1.msra.mxu0 %v617
    %864 = vmatprep.subr.mxu0 %v622
    %865 = vmatpush1.msra.mxu0 %v621
    %866 = vmatprep.subr.mxu0 %v626
    %867 = vmatpush1.msra.mxu0 %v625
    %868 = vmatprep.subr.mxu0 %v630
    %869 = vmatpush1.msra.mxu0 %v629
    %870 = vmatprep.subr.mxu0 %v634
    %871 = vmatpush1.msra.mxu0 %v633
    %872 = vmatprep.subr.mxu0 %v638
    %873 = vmatpush1.msra.mxu0 %v637
    %874 = vmatprep.subr.mxu0 %v642
    %875 = vmatpush1.msra.mxu0 %v641
    %876 = vmatprep.subr.mxu0 0.0
    %877 = vmatpush1.msra.mxu0 0.0
    %878 = vmatprep.subr.mxu0 0.0
    %879 = vmatpush1.msra.mxu0 0.0
    %880 = vmatprep.subr.mxu0 0.0
    %881 = vmatpush1.msra.mxu0 0.0
    %882 = vmatprep.subr.mxu0 0.0
    %883 = vmatpush1.msra.mxu0 0.0
    %884 = vmatprep.subr.mxu0 0.0
    %885 = vmatpush1.msra.mxu0 0.0
    %886 = vmatprep.subr.mxu0 0.0
    %887 = vmatpush1.msra.mxu0 0.0
    %888 = vmatprep.subr.mxu0 0.0
    %889 = vmatpush1.msra.mxu0 0.0
    %890 = vmatprep.subr.mxu0 0.0
    %891 = vmatpush1.msra.mxu0 0.0
    %892 = vmatprep.subr.mxu0 0.0
    %893 = vmatpush1.msra.mxu0 0.0
    %894 = vmatprep.subr.mxu0 0.0
    %895 = vmatpush1.msra.mxu0 0.0
    %896 = vmatprep.subr.mxu0 0.0
    %897 = vmatpush1.msra.mxu0 0.0
    %898 = vmatprep.subr.mxu0 0.0
    %899 = vmatpush1.msra.mxu0 0.0
    %900 = vmatprep.subr.mxu0 0.0
    %901 = vmatpush1.msra.mxu0 0.0
    %902 = vmatprep.subr.mxu0 0.0
    %903 = vmatpush1.msra.mxu0 0.0
    %904 = vmatprep.subr.mxu0 0.0
    %905 = vmatpush1.msra.mxu0 0.0
    %906 = vmatprep.subr.mxu0 0.0
    %907 = vmatpush1.msra.mxu0 0.0
    %908 = vmatprep.mubr.f32.mxu0 0.0
    %909 = vmatmul.mubr.f32.gmra.mrb[0].mxu0 %v841
    %v910 = vpop.f32.mrb[0].mxu0
    %v911 = vadd.f32 0.0, %v910
    %v912 = vpop.f32.mrb[0].mxu0
    %v913 = vadd.f32 0.0, %v912
    %914 = vdwg.mxu0
    %915 = vmatprep.subr.mxu0 %v584
    %916 = vmatpush1.msra.mxu0 %v583
    %917 = vmatprep.subr.mxu0 %v588
    %918 = vmatpush1.msra.mxu0 %v587
    %919 = vmatprep.subr.mxu0 %v592
    %920 = vmatpush1.msra.mxu0 %v591
    %921 = vmatprep.subr.mxu0 %v596
    %922 = vmatpush1.msra.mxu0 %v595
    %923 = vmatprep.subr.mxu0 %v600
    %924 = vmatpush1.msra.mxu0 %v599
    %925 = vmatprep.subr.mxu0 %v604
    %926 = vmatpush1.msra.mxu0 %v603
    %927 = vmatprep.subr.mxu0 %v608
    %928 = vmatpush1.msra.mxu0 %v607
    %929 = vmatprep.subr.mxu0 %v612
    %930 = vmatpush1.msra.mxu0 %v611
    %931 = vmatprep.subr.mxu0 %v616
    %932 = vmatpush1.msra.mxu0 %v615
    %933 = vmatprep.subr.mxu0 %v620
    %934 = vmatpush1.msra.mxu0 %v619
    %935 = vmatprep.subr.mxu0 %v624
    %936 = vmatpush1.msra.mxu0 %v623
    %937 = vmatprep.subr.mxu0 %v628
    %938 = vmatpush1.msra.mxu0 %v627
    %939 = vmatprep.subr.mxu0 %v632
    %940 = vmatpush1.msra.mxu0 %v631
    %941 = vmatprep.subr.mxu0 %v636
    %942 = vmatpush1.msra.mxu0 %v635
    %943 = vmatprep.subr.mxu0 %v640
    %944 = vmatpush1.msra.mxu0 %v639
    %945 = vmatprep.subr.mxu0 %v644
    %946 = vmatpush1.msra.mxu0 %v643
    %947 = vmatprep.subr.mxu0 0.0
    %948 = vmatpush1.msra.mxu0 0.0
    %949 = vmatprep.subr.mxu0 0.0
    %950 = vmatpush1.msra.mxu0 0.0
    %951 = vmatprep.subr.mxu0 0.0
    %952 = vmatpush1.msra.mxu0 0.0
    %953 = vmatprep.subr.mxu0 0.0
    %954 = vmatpush1.msra.mxu0 0.0
    %955 = vmatprep.subr.mxu0 0.0
    %956 = vmatpush1.msra.mxu0 0.0
    %957 = vmatprep.subr.mxu0 0.0
    %958 = vmatpush1.msra.mxu0 0.0
    %959 = vmatprep.subr.mxu0 0.0
    %960 = vmatpush1.msra.mxu0 0.0
    %961 = vmatprep.subr.mxu0 0.0
    %962 = vmatpush1.msra.mxu0 0.0
    %963 = vmatprep.subr.mxu0 0.0
    %964 = vmatpush1.msra.mxu0 0.0
    %965 = vmatprep.subr.mxu0 0.0
    %966 = vmatpush1.msra.mxu0 0.0
    %967 = vmatprep.subr.mxu0 0.0
    %968 = vmatpush1.msra.mxu0 0.0
    %969 = vmatprep.subr.mxu0 0.0
    %970 = vmatpush1.msra.mxu0 0.0
    %971 = vmatprep.subr.mxu0 0.0
    %972 = vmatpush1.msra.mxu0 0.0
    %973 = vmatprep.subr.mxu0 0.0
    %974 = vmatpush1.msra.mxu0 0.0
    %975 = vmatprep.subr.mxu0 0.0
    %976 = vmatpush1.msra.mxu0 0.0
    %977 = vmatprep.subr.mxu0 0.0
    %978 = vmatpush1.msra.mxu0 0.0
    %979 = vmatprep.mubr.f32.mxu0 0.0
    %980 = vmatmul.mubr.f32.gmra.mrb[0].mxu0 %v841
    %v981 = vpop.f32.mrb[0].mxu0
    %v982 = vadd.f32 0.0, %v981
    %v983 = vpop.f32.mrb[0].mxu0
    %v984 = vadd.f32 0.0, %v983
    %985 = vdwg.mxu0
    %v990 = vcombine.low %v911, %v913
    %v991 = vcombine.low %v982, %v984
    %v993 = vunpack.c.l.s4 1983009808
    %v994 = vunpack.c.0.s8 %v993
    %v995 = vlaneseq
    %v996 = vshrl.u32 %v995, 7
    %v997 = vsub.s32 %v994, %v996
    %v998 = vrot.slane %v990, %v997
    %v1000 = vunpack.c.l.s4 1983009808
    %v1001 = vunpack.c.0.s8 %v1000
    %v1002 = vlaneseq
    %v1003 = vshrl.u32 %v1002, 7
    %v1004 = vsub.s32 %v1001, %v1003
    %v1005 = vrot.slane %v991, %v1004
    %v1006 = vcombine.low %v998, %v1005
    %v1008 = vadd.f32 %v843, %v1006
    %v1009 = vxor.u32 %v1008, 2147483648
    %v1010 = vmul.f32 %v1009, 1.442695
    %v1011 = vpow.pop %v1010
    %v1012 = vadd.f32 %v1011, 1.0
    %v1013 = vrcp.pop %v1012
    %v1014 = vmul.f32 1.0, %v1013
    %v1016 = vrot.slane %v1008, 2
    %v1018 = vxor.u32 %v1016, 2147483648
    %v1019 = vmul.f32 %v1018, 1.442695
    %v1020 = vpow.pop %v1019
    %v1021 = vadd.f32 %v1020, 1.0
    %v1022 = vrcp.pop %v1021
    %v1023 = vmul.f32 1.0, %v1022
    %v1024 = vrot.slane %v1008, 4
    %v1026 = vtanh.pop %v1024
    %v1027 = vrot.slane %v1008, 6
    %v1029 = vxor.u32 %v1027, 2147483648
    %v1030 = vmul.f32 %v1029, 1.442695
    %v1031 = vpow.pop %v1030
    %v1032 = vadd.f32 %v1031, 1.0
    %v1033 = vrcp.pop %v1032
    %v1034 = vmul.f32 1.0, %v1033
    %v1035 = vmul.f32 %v1023, %v839
    %v1036 = vmul.f32 %v1014, %v1026
    %v1037 = vadd.f32 %v1035, %v1036
    %v1038 = vtanh.pop %v1037
    %v1039 = vmul.f32 %v1034, %v1038
    %s1040 = scalar_lea.vmem [#allocation2], 16
    %v1041 = vld [vmem:[%s1040] sm:$0xff]
    %1042 = vmatprep.subr.mxu0 %v582
    %1043 = vmatpush1.msra.mxu0 %v581
    %1044 = vmatprep.subr.mxu0 %v586
    %1045 = vmatpush1.msra.mxu0 %v585
    %1046 = vmatprep.subr.mxu0 %v590
    %1047 = vmatpush1.msra.mxu0 %v589
    %1048 = vmatprep.subr.mxu0 %v594
    %1049 = vmatpush1.msra.mxu0 %v593
    %1050 = vmatprep.subr.mxu0 %v598
    %1051 = vmatpush1.msra.mxu0 %v597
    %1052 = vmatprep.subr.mxu0 %v602
    %1053 = vmatpush1.msra.mxu0 %v601
    %1054 = vmatprep.subr.mxu0 %v606
    %1055 = vmatpush1.msra.mxu0 %v605
    %1056 = vmatprep.subr.mxu0 %v610
    %1057 = vmatpush1.msra.mxu0 %v609
    %1058 = vmatprep.subr.mxu0 %v614
    %1059 = vmatpush1.msra.mxu0 %v613
    %1060 = vmatprep.subr.mxu0 %v618
    %1061 = vmatpush1.msra.mxu0 %v617
    %1062 = vmatprep.subr.mxu0 %v622
    %1063 = vmatpush1.msra.mxu0 %v621
    %1064 = vmatprep.subr.mxu0 %v626
    %1065 = vmatpush1.msra.mxu0 %v625
    %1066 = vmatprep.subr.mxu0 %v630
    %1067 = vmatpush1.msra.mxu0 %v629
    %1068 = vmatprep.subr.mxu0 %v634
    %1069 = vmatpush1.msra.mxu0 %v633
    %1070 = vmatprep.subr.mxu0 %v638
    %1071 = vmatpush1.msra.mxu0 %v637
    %1072 = vmatprep.subr.mxu0 %v642
    %1073 = vmatpush1.msra.mxu0 %v641
    %1074 = vmatprep.subr.mxu0 0.0
    %1075 = vmatpush1.msra.mxu0 0.0
    %1076 = vmatprep.subr.mxu0 0.0
    %1077 = vmatpush1.msra.mxu0 0.0
    %1078 = vmatprep.subr.mxu0 0.0
    %1079 = vmatpush1.msra.mxu0 0.0
    %1080 = vmatprep.subr.mxu0 0.0
    %1081 = vmatpush1.msra.mxu0 0.0
    %1082 = vmatprep.subr.mxu0 0.0
    %1083 = vmatpush1.msra.mxu0 0.0
    %1084 = vmatprep.subr.mxu0 0.0
    %1085 = vmatpush1.msra.mxu0 0.0
    %1086 = vmatprep.subr.mxu0 0.0
    %1087 = vmatpush1.msra.mxu0 0.0
    %1088 = vmatprep.subr.mxu0 0.0
    %1089 = vmatpush1.msra.mxu0 0.0
    %1090 = vmatprep.subr.mxu0 0.0
    %1091 = vmatpush1.msra.mxu0 0.0
    %1092 = vmatprep.subr.mxu0 0.0
    %1093 = vmatpush1.msra.mxu0 0.0
    %1094 = vmatprep.subr.mxu0 0.0
    %1095 = vmatpush1.msra.mxu0 0.0
    %1096 = vmatprep.subr.mxu0 0.0
    %1097 = vmatpush1.msra.mxu0 0.0
    %1098 = vmatprep.subr.mxu0 0.0
    %1099 = vmatpush1.msra.mxu0 0.0
    %1100 = vmatprep.subr.mxu0 0.0
    %1101 = vmatpush1.msra.mxu0 0.0
    %1102 = vmatprep.subr.mxu0 0.0
    %1103 = vmatpush1.msra.mxu0 0.0
    %1104 = vmatprep.subr.mxu0 0.0
    %1105 = vmatpush1.msra.mxu0 0.0
    %1106 = vmatprep.mubr.f32.mxu0 0.0
    %1107 = vmatmul.mubr.f32.gmra.mrb[0].mxu0 %v1039
    %v1108 = vpop.f32.mrb[0].mxu0
    %v1109 = vadd.f32 0.0, %v1108
    %v1110 = vpop.f32.mrb[0].mxu0
    %v1111 = vadd.f32 0.0, %v1110
    %1112 = vdwg.mxu0
    %1113 = vmatprep.subr.mxu0 %v584
    %1114 = vmatpush1.msra.mxu0 %v583
    %1115 = vmatprep.subr.mxu0 %v588
    %1116 = vmatpush1.msra.mxu0 %v587
    %1117 = vmatprep.subr.mxu0 %v592
    %1118 = vmatpush1.msra.mxu0 %v591
    %1119 = vmatprep.subr.mxu0 %v596
    %1120 = vmatpush1.msra.mxu0 %v595
    %1121 = vmatprep.subr.mxu0 %v600
    %1122 = vmatpush1.msra.mxu0 %v599
    %1123 = vmatprep.subr.mxu0 %v604
    %1124 = vmatpush1.msra.mxu0 %v603
    %1125 = vmatprep.subr.mxu0 %v608
    %1126 = vmatpush1.msra.mxu0 %v607
    %1127 = vmatprep.subr.mxu0 %v612
    %1128 = vmatpush1.msra.mxu0 %v611
    %1129 = vmatprep.subr.mxu0 %v616
    %1130 = vmatpush1.msra.mxu0 %v615
    %1131 = vmatprep.subr.mxu0 %v620
    %1132 = vmatpush1.msra.mxu0 %v619
    %1133 = vmatprep.subr.mxu0 %v624
    %1134 = vmatpush1.msra.mxu0 %v623
    %1135 = vmatprep.subr.mxu0 %v628
    %1136 = vmatpush1.msra.mxu0 %v627
    %1137 = vmatprep.subr.mxu0 %v632
    %1138 = vmatpush1.msra.mxu0 %v631
    %1139 = vmatprep.subr.mxu0 %v636
    %1140 = vmatpush1.msra.mxu0 %v635
    %1141 = vmatprep.subr.mxu0 %v640
    %1142 = vmatpush1.msra.mxu0 %v639
    %1143 = vmatprep.subr.mxu0 %v644
    %1144 = vmatpush1.msra.mxu0 %v643
    %1145 = vmatprep.subr.mxu0 0.0
    %1146 = vmatpush1.msra.mxu0 0.0
    %1147 = vmatprep.subr.mxu0 0.0
    %1148 = vmatpush1.msra.mxu0 0.0
    %1149 = vmatprep.subr.mxu0 0.0
    %1150 = vmatpush1.msra.mxu0 0.0
    %1151 = vmatprep.subr.mxu0 0.0
    %1152 = vmatpush1.msra.mxu0 0.0
    %1153 = vmatprep.subr.mxu0 0.0
    %1154 = vmatpush1.msra.mxu0 0.0
    %1155 = vmatprep.subr.mxu0 0.0
    %1156 = vmatpush1.msra.mxu0 0.0
    %1157 = vmatprep.subr.mxu0 0.0
    %1158 = vmatpush1.msra.mxu0 0.0
    %1159 = vmatprep.subr.mxu0 0.0
    %1160 = vmatpush1.msra.mxu0 0.0
    %1161 = vmatprep.subr.mxu0 0.0
    %1162 = vmatpush1.msra.mxu0 0.0
    %1163 = vmatprep.subr.mxu0 0.0
    %1164 = vmatpush1.msra.mxu0 0.0
    %1165 = vmatprep.subr.mxu0 0.0
    %1166 = vmatpush1.msra.mxu0 0.0
    %1167 = vmatprep.subr.mxu0 0.0
    %1168 = vmatpush1.msra.mxu0 0.0
    %1169 = vmatprep.subr.mxu0 0.0
    %1170 = vmatpush1.msra.mxu0 0.0
    %1171 = vmatprep.subr.mxu0 0.0
    %1172 = vmatpush1.msra.mxu0 0.0
    %1173 = vmatprep.subr.mxu0 0.0
    %1174 = vmatpush1.msra.mxu0 0.0
    %1175 = vmatprep.subr.mxu0 0.0
    %1176 = vmatpush1.msra.mxu0 0.0
    %1177 = vmatprep.mubr.f32.mxu0 0.0
    %1178 = vmatmul.mubr.f32.gmra.mrb[0].mxu0 %v1039
    %v1179 = vpop.f32.mrb[0].mxu0
    %v1180 = vadd.f32 0.0, %v1179
    %v1181 = vpop.f32.mrb[0].mxu0
    %v1182 = vadd.f32 0.0, %v1181
    %1183 = vdwg.mxu0
    %v1188 = vcombine.low %v1109, %v1111
    %v1189 = vcombine.low %v1180, %v1182
    %v1191 = vunpack.c.l.s4 1983009808
    %v1192 = vunpack.c.0.s8 %v1191
    %v1193 = vlaneseq
    %v1194 = vshrl.u32 %v1193, 7
    %v1195 = vsub.s32 %v1192, %v1194
    %v1196 = vrot.slane %v1188, %v1195
    %v1198 = vunpack.c.l.s4 1983009808
    %v1199 = vunpack.c.0.s8 %v1198
    %v1200 = vlaneseq
    %v1201 = vshrl.u32 %v1200, 7
    %v1202 = vsub.s32 %v1199, %v1201
    %v1203 = vrot.slane %v1189, %v1202
    %v1204 = vcombine.low %v1196, %v1203
    %v1206 = vadd.f32 %v1041, %v1204
    %v1207 = vxor.u32 %v1206, 2147483648
    %v1208 = vmul.f32 %v1207, 1.442695
    %v1209 = vpow.pop %v1208
    %v1210 = vadd.f32 %v1209, 1.0
    %v1211 = vrcp.pop %v1210
    %v1212 = vmul.f32 1.0, %v1211
    %v1214 = vrot.slane %v1206, 2
    %v1216 = vxor.u32 %v1214, 2147483648
    %v1217 = vmul.f32 %v1216, 1.442695
    %v1218 = vpow.pop %v1217
    %v1219 = vadd.f32 %v1218, 1.0
    %v1220 = vrcp.pop %v1219
    %v1221 = vmul.f32 1.0, %v1220
    %v1222 = vrot.slane %v1206, 4
    %v1224 = vtanh.pop %v1222
    %v1225 = vrot.slane %v1206, 6
    %v1227 = vxor.u32 %v1225, 2147483648
    %v1228 = vmul.f32 %v1227, 1.442695
    %v1229 = vpow.pop %v1228
    %v1230 = vadd.f32 %v1229, 1.0
    %v1231 = vrcp.pop %v1230
    %v1232 = vmul.f32 1.0, %v1231
    %v1233 = vmul.f32 %v1221, %v1037
    %v1234 = vmul.f32 %v1212, %v1224
    %v1235 = vadd.f32 %v1233, %v1234
    %v1236 = vtanh.pop %v1235
    %v1237 = vmul.f32 %v1232, %v1236
    %s1238 = scalar_lea.vmem [#allocation2], 24
    %v1239 = vld [vmem:[%s1238] sm:$0xff]
    %1240 = vmatprep.subr.mxu0 %v582
    %1241 = vmatpush1.msra.mxu0 %v581
    %1242 = vmatprep.subr.mxu0 %v586
    %1243 = vmatpush1.msra.mxu0 %v585
    %1244 = vmatprep.subr.mxu0 %v590
    %1245 = vmatpush1.msra.mxu0 %v589
    %1246 = vmatprep.subr.mxu0 %v594
    %1247 = vmatpush1.msra.mxu0 %v593
    %1248 = vmatprep.subr.mxu0 %v598
    %1249 = vmatpush1.msra.mxu0 %v597
    %1250 = vmatprep.subr.mxu0 %v602
    %1251 = vmatpush1.msra.mxu0 %v601
    %1252 = vmatprep.subr.mxu0 %v606
    %1253 = vmatpush1.msra.mxu0 %v605
    %1254 = vmatprep.subr.mxu0 %v610
    %1255 = vmatpush1.msra.mxu0 %v609
    %1256 = vmatprep.subr.mxu0 %v614
    %1257 = vmatpush1.msra.mxu0 %v613
    %1258 = vmatprep.subr.mxu0 %v618
    %1259 = vmatpush1.msra.mxu0 %v617
    %1260 = vmatprep.subr.mxu0 %v622
    %1261 = vmatpush1.msra.mxu0 %v621
    %1262 = vmatprep.subr.mxu0 %v626
    %1263 = vmatpush1.msra.mxu0 %v625
    %1264 = vmatprep.subr.mxu0 %v630
    %1265 = vmatpush1.msra.mxu0 %v629
    %1266 = vmatprep.subr.mxu0 %v634
    %1267 = vmatpush1.msra.mxu0 %v633
    %1268 = vmatprep.subr.mxu0 %v638
    %1269 = vmatpush1.msra.mxu0 %v637
    %1270 = vmatprep.subr.mxu0 %v642
    %1271 = vmatpush1.msra.mxu0 %v641
    %1272 = vmatprep.subr.mxu0 0.0
    %1273 = vmatpush1.msra.mxu0 0.0
    %1274 = vmatprep.subr.mxu0 0.0
    %1275 = vmatpush1.msra.mxu0 0.0
    %1276 = vmatprep.subr.mxu0 0.0
    %1277 = vmatpush1.msra.mxu0 0.0
    %1278 = vmatprep.subr.mxu0 0.0
    %1279 = vmatpush1.msra.mxu0 0.0
    %1280 = vmatprep.subr.mxu0 0.0
    %1281 = vmatpush1.msra.mxu0 0.0
    %1282 = vmatprep.subr.mxu0 0.0
    %1283 = vmatpush1.msra.mxu0 0.0
    %1284 = vmatprep.subr.mxu0 0.0
    %1285 = vmatpush1.msra.mxu0 0.0
    %1286 = vmatprep.subr.mxu0 0.0
    %1287 = vmatpush1.msra.mxu0 0.0
    %1288 = vmatprep.subr.mxu0 0.0
    %1289 = vmatpush1.msra.mxu0 0.0
    %1290 = vmatprep.subr.mxu0 0.0
    %1291 = vmatpush1.msra.mxu0 0.0
    %1292 = vmatprep.subr.mxu0 0.0
    %1293 = vmatpush1.msra.mxu0 0.0
    %1294 = vmatprep.subr.mxu0 0.0
    %1295 = vmatpush1.msra.mxu0 0.0
    %1296 = vmatprep.subr.mxu0 0.0
    %1297 = vmatpush1.msra.mxu0 0.0
    %1298 = vmatprep.subr.mxu0 0.0
    %1299 = vmatpush1.msra.mxu0 0.0
    %1300 = vmatprep.subr.mxu0 0.0
    %1301 = vmatpush1.msra.mxu0 0.0
    %1302 = vmatprep.subr.mxu0 0.0
    %1303 = vmatpush1.msra.mxu0 0.0
    %1304 = vmatprep.mubr.f32.mxu0 0.0
    %1305 = vmatmul.mubr.f32.gmra.mrb[0].mxu0 %v1237
    %v1306 = vpop.f32.mrb[0].mxu0
    %v1307 = vadd.f32 0.0, %v1306
    %v1308 = vpop.f32.mrb[0].mxu0
    %v1309 = vadd.f32 0.0, %v1308
    %1310 = vdwg.mxu0
    %1311 = vmatprep.subr.mxu0 %v584
    %1312 = vmatpush1.msra.mxu0 %v583
    %1313 = vmatprep.subr.mxu0 %v588
    %1314 = vmatpush1.msra.mxu0 %v587
    %1315 = vmatprep.subr.mxu0 %v592
    %1316 = vmatpush1.msra.mxu0 %v591
    %1317 = vmatprep.subr.mxu0 %v596
    %1318 = vmatpush1.msra.mxu0 %v595
    %1319 = vmatprep.subr.mxu0 %v600
    %1320 = vmatpush1.msra.mxu0 %v599
    %1321 = vmatprep.subr.mxu0 %v604
    %1322 = vmatpush1.msra.mxu0 %v603
    %1323 = vmatprep.subr.mxu0 %v608
    %1324 = vmatpush1.msra.mxu0 %v607
    %1325 = vmatprep.subr.mxu0 %v612
    %1326 = vmatpush1.msra.mxu0 %v611
    %1327 = vmatprep.subr.mxu0 %v616
    %1328 = vmatpush1.msra.mxu0 %v615
    %1329 = vmatprep.subr.mxu0 %v620
    %1330 = vmatpush1.msra.mxu0 %v619
    %1331 = vmatprep.subr.mxu0 %v624
    %1332 = vmatpush1.msra.mxu0 %v623
    %1333 = vmatprep.subr.mxu0 %v628
    %1334 = vmatpush1.msra.mxu0 %v627
    %1335 = vmatprep.subr.mxu0 %v632
    %1336 = vmatpush1.msra.mxu0 %v631
    %1337 = vmatprep.subr.mxu0 %v636
    %1338 = vmatpush1.msra.mxu0 %v635
    %1339 = vmatprep.subr.mxu0 %v640
    %1340 = vmatpush1.msra.mxu0 %v639
    %1341 = vmatprep.subr.mxu0 %v644
    %1342 = vmatpush1.msra.mxu0 %v643
    %1343 = vmatprep.subr.mxu0 0.0
    %1344 = vmatpush1.msra.mxu0 0.0
    %1345 = vmatprep.subr.mxu0 0.0
    %1346 = vmatpush1.msra.mxu0 0.0
    %1347 = vmatprep.subr.mxu0 0.0
    %1348 = vmatpush1.msra.mxu0 0.0
    %1349 = vmatprep.subr.mxu0 0.0
    %1350 = vmatpush1.msra.mxu0 0.0
    %1351 = vmatprep.subr.mxu0 0.0
    %1352 = vmatpush1.msra.mxu0 0.0
    %1353 = vmatprep.subr.mxu0 0.0
    %1354 = vmatpush1.msra.mxu0 0.0
    %1355 = vmatprep.subr.mxu0 0.0
    %1356 = vmatpush1.msra.mxu0 0.0
    %1357 = vmatprep.subr.mxu0 0.0
    %1358 = vmatpush1.msra.mxu0 0.0
    %1359 = vmatprep.subr.mxu0 0.0
    %1360 = vmatpush1.msra.mxu0 0.0
    %1361 = vmatprep.subr.mxu0 0.0
    %1362 = vmatpush1.msra.mxu0 0.0
    %1363 = vmatprep.subr.mxu0 0.0
    %1364 = vmatpush1.msra.mxu0 0.0
    %1365 = vmatprep.subr.mxu0 0.0
    %1366 = vmatpush1.msra.mxu0 0.0
    %1367 = vmatprep.subr.mxu0 0.0
    %1368 = vmatpush1.msra.mxu0 0.0
    %1369 = vmatprep.subr.mxu0 0.0
    %1370 = vmatpush1.msra.mxu0 0.0
    %1371 = vmatprep.subr.mxu0 0.0
    %1372 = vmatpush1.msra.mxu0 0.0
    %1373 = vmatprep.subr.mxu0 0.0
    %1374 = vmatpush1.msra.mxu0 0.0
    %1375 = vmatprep.mubr.f32.mxu0 0.0
    %1376 = vmatmul.mubr.f32.gmra.mrb[0].mxu0 %v1237
    %v1377 = vpop.f32.mrb[0].mxu0
    %v1378 = vadd.f32 0.0, %v1377
    %v1379 = vpop.f32.mrb[0].mxu0
    %v1380 = vadd.f32 0.0, %v1379
    %1381 = vdwg.mxu0
    %v1386 = vcombine.low %v1307, %v1309
    %v1387 = vcombine.low %v1378, %v1380
    %v1389 = vunpack.c.l.s4 1983009808
    %v1390 = vunpack.c.0.s8 %v1389
    %v1391 = vlaneseq
    %v1392 = vshrl.u32 %v1391, 7
    %v1393 = vsub.s32 %v1390, %v1392
    %v1394 = vrot.slane %v1386, %v1393
    %v1396 = vunpack.c.l.s4 1983009808
    %v1397 = vunpack.c.0.s8 %v1396
    %v1398 = vlaneseq
    %v1399 = vshrl.u32 %v1398, 7
    %v1400 = vsub.s32 %v1397, %v1399
    %v1401 = vrot.slane %v1387, %v1400
    %v1402 = vcombine.low %v1394, %v1401
    %v1404 = vadd.f32 %v1239, %v1402
    %v1405 = vxor.u32 %v1404, 2147483648
    %v1406 = vmul.f32 %v1405, 1.442695
    %v1407 = vpow.pop %v1406
    %v1408 = vadd.f32 %v1407, 1.0
    %v1409 = vrcp.pop %v1408
    %v1410 = vmul.f32 1.0, %v1409
    %v1412 = vrot.slane %v1404, 2
    %v1414 = vxor.u32 %v1412, 2147483648
    %v1415 = vmul.f32 %v1414, 1.442695
    %v1416 = vpow.pop %v1415
    %v1417 = vadd.f32 %v1416, 1.0
    %v1418 = vrcp.pop %v1417
    %v1419 = vmul.f32 1.0, %v1418
    %v1420 = vrot.slane %v1404, 4
    %v1422 = vtanh.pop %v1420
    %v1423 = vrot.slane %v1404, 6
    %v1425 = vxor.u32 %v1423, 2147483648
    %v1426 = vmul.f32 %v1425, 1.442695
    %v1427 = vpow.pop %v1426
    %v1428 = vadd.f32 %v1427, 1.0
    %v1429 = vrcp.pop %v1428
    %v1430 = vmul.f32 1.0, %v1429
    %v1431 = vmul.f32 %v1419, %v1235
    %v1432 = vmul.f32 %v1410, %v1422
    %v1433 = vadd.f32 %v1431, %v1432
    %v1434 = vtanh.pop %v1433
    %v1435 = vmul.f32 %v1430, %v1434
    %s1436 = scalar_lea.vmem [#allocation2], 32
    %v1437 = vld [vmem:[%s1436] sm:$0xff]
    %1438 = vmatprep.subr.mxu0 %v582
    %1439 = vmatpush1.msra.mxu0 %v581
    %1440 = vmatprep.subr.mxu0 %v586
    %1441 = vmatpush1.msra.mxu0 %v585
    %1442 = vmatprep.subr.mxu0 %v590
    %1443 = vmatpush1.msra.mxu0 %v589
    %1444 = vmatprep.subr.mxu0 %v594
    %1445 = vmatpush1.msra.mxu0 %v593
    %1446 = vmatprep.subr.mxu0 %v598
    %1447 = vmatpush1.msra.mxu0 %v597
    %1448 = vmatprep.subr.mxu0 %v602
    %1449 = vmatpush1.msra.mxu0 %v601
    %1450 = vmatprep.subr.mxu0 %v606
    %1451 = vmatpush1.msra.mxu0 %v605
    %1452 = vmatprep.subr.mxu0 %v610
    %1453 = vmatpush1.msra.mxu0 %v609
    %1454 = vmatprep.subr.mxu0 %v614
    %1455 = vmatpush1.msra.mxu0 %v613
    %1456 = vmatprep.subr.mxu0 %v618
    %1457 = vmatpush1.msra.mxu0 %v617
    %1458 = vmatprep.subr.mxu0 %v622
    %1459 = vmatpush1.msra.mxu0 %v621
    %1460 = vmatprep.subr.mxu0 %v626
    %1461 = vmatpush1.msra.mxu0 %v625
    %1462 = vmatprep.subr.mxu0 %v630
    %1463 = vmatpush1.msra.mxu0 %v629
    %1464 = vmatprep.subr.mxu0 %v634
    %1465 = vmatpush1.msra.mxu0 %v633
    %1466 = vmatprep.subr.mxu0 %v638
    %1467 = vmatpush1.msra.mxu0 %v637
    %1468 = vmatprep.subr.mxu0 %v642
    %1469 = vmatpush1.msra.mxu0 %v641
    %1470 = vmatprep.subr.mxu0 0.0
    %1471 = vmatpush1.msra.mxu0 0.0
    %1472 = vmatprep.subr.mxu0 0.0
    %1473 = vmatpush1.msra.mxu0 0.0
    %1474 = vmatprep.subr.mxu0 0.0
    %1475 = vmatpush1.msra.mxu0 0.0
    %1476 = vmatprep.subr.mxu0 0.0
    %1477 = vmatpush1.msra.mxu0 0.0
    %1478 = vmatprep.subr.mxu0 0.0
    %1479 = vmatpush1.msra.mxu0 0.0
    %1480 = vmatprep.subr.mxu0 0.0
    %1481 = vmatpush1.msra.mxu0 0.0
    %1482 = vmatprep.subr.mxu0 0.0
    %1483 = vmatpush1.msra.mxu0 0.0
    %1484 = vmatprep.subr.mxu0 0.0
    %1485 = vmatpush1.msra.mxu0 0.0
    %1486 = vmatprep.subr.mxu0 0.0
    %1487 = vmatpush1.msra.mxu0 0.0
    %1488 = vmatprep.subr.mxu0 0.0
    %1489 = vmatpush1.msra.mxu0 0.0
    %1490 = vmatprep.subr.mxu0 0.0
    %1491 = vmatpush1.msra.mxu0 0.0
    %1492 = vmatprep.subr.mxu0 0.0
    %1493 = vmatpush1.msra.mxu0 0.0
    %1494 = vmatprep.subr.mxu0 0.0
    %1495 = vmatpush1.msra.mxu0 0.0
    %1496 = vmatprep.subr.mxu0 0.0
    %1497 = vmatpush1.msra.mxu0 0.0
    %1498 = vmatprep.subr.mxu0 0.0
    %1499 = vmatpush1.msra.mxu0 0.0
    %1500 = vmatprep.subr.mxu0 0.0
    %1501 = vmatpush1.msra.mxu0 0.0
    %1502 = vmatprep.mubr.f32.mxu0 0.0
    %1503 = vmatmul.mubr.f32.gmra.mrb[0].mxu0 %v1435
    %v1504 = vpop.f32.mrb[0].mxu0
    %v1505 = vadd.f32 0.0, %v1504
    %v1506 = vpop.f32.mrb[0].mxu0
    %v1507 = vadd.f32 0.0, %v1506
    %1508 = vdwg.mxu0
    %1509 = vmatprep.subr.mxu0 %v584
    %1510 = vmatpush1.msra.mxu0 %v583
    %1511 = vmatprep.subr.mxu0 %v588
    %1512 = vmatpush1.msra.mxu0 %v587
    %1513 = vmatprep.subr.mxu0 %v592
    %1514 = vmatpush1.msra.mxu0 %v591
    %1515 = vmatprep.subr.mxu0 %v596
    %1516 = vmatpush1.msra.mxu0 %v595
    %1517 = vmatprep.subr.mxu0 %v600
    %1518 = vmatpush1.msra.mxu0 %v599
    %1519 = vmatprep.subr.mxu0 %v604
    %1520 = vmatpush1.msra.mxu0 %v603
    %1521 = vmatprep.subr.mxu0 %v608
    %1522 = vmatpush1.msra.mxu0 %v607
    %1523 = vmatprep.subr.mxu0 %v612
    %1524 = vmatpush1.msra.mxu0 %v611
    %1525 = vmatprep.subr.mxu0 %v616
    %1526 = vmatpush1.msra.mxu0 %v615
    %1527 = vmatprep.subr.mxu0 %v620
    %1528 = vmatpush1.msra.mxu0 %v619
    %1529 = vmatprep.subr.mxu0 %v624
    %1530 = vmatpush1.msra.mxu0 %v623
    %1531 = vmatprep.subr.mxu0 %v628
    %1532 = vmatpush1.msra.mxu0 %v627
    %1533 = vmatprep.subr.mxu0 %v632
    %1534 = vmatpush1.msra.mxu0 %v631
    %1535 = vmatprep.subr.mxu0 %v636
    %1536 = vmatpush1.msra.mxu0 %v635
    %1537 = vmatprep.subr.mxu0 %v640
    %1538 = vmatpush1.msra.mxu0 %v639
    %1539 = vmatprep.subr.mxu0 %v644
    %1540 = vmatpush1.msra.mxu0 %v643
    %1541 = vmatprep.subr.mxu0 0.0
    %1542 = vmatpush1.msra.mxu0 0.0
    %1543 = vmatprep.subr.mxu0 0.0
    %1544 = vmatpush1.msra.mxu0 0.0
    %1545 = vmatprep.subr.mxu0 0.0
    %1546 = vmatpush1.msra.mxu0 0.0
    %1547 = vmatprep.subr.mxu0 0.0
    %1548 = vmatpush1.msra.mxu0 0.0
    %1549 = vmatprep.subr.mxu0 0.0
    %1550 = vmatpush1.msra.mxu0 0.0
    %1551 = vmatprep.subr.mxu0 0.0
    %1552 = vmatpush1.msra.mxu0 0.0
    %1553 = vmatprep.subr.mxu0 0.0
    %1554 = vmatpush1.msra.mxu0 0.0
    %1555 = vmatprep.subr.mxu0 0.0
    %1556 = vmatpush1.msra.mxu0 0.0
    %1557 = vmatprep.subr.mxu0 0.0
    %1558 = vmatpush1.msra.mxu0 0.0
    %1559 = vmatprep.subr.mxu0 0.0
    %1560 = vmatpush1.msra.mxu0 0.0
    %1561 = vmatprep.subr.mxu0 0.0
    %1562 = vmatpush1.msra.mxu0 0.0
    %1563 = vmatprep.subr.mxu0 0.0
    %1564 = vmatpush1.msra.mxu0 0.0
    %1565 = vmatprep.subr.mxu0 0.0
    %1566 = vmatpush1.msra.mxu0 0.0
    %1567 = vmatprep.subr.mxu0 0.0
    %1568 = vmatpush1.msra.mxu0 0.0
    %1569 = vmatprep.subr.mxu0 0.0
    %1570 = vmatpush1.msra.mxu0 0.0
    %1571 = vmatprep.subr.mxu0 0.0
    %1572 = vmatpush1.msra.mxu0 0.0
    %1573 = vmatprep.mubr.f32.mxu0 0.0
    %1574 = vmatmul.mubr.f32.gmra.mrb[0].mxu0 %v1435
    %v1575 = vpop.f32.mrb[0].mxu0
    %v1576 = vadd.f32 0.0, %v1575
    %v1577 = vpop.f32.mrb[0].mxu0
    %v1578 = vadd.f32 0.0, %v1577
    %1579 = vdwg.mxu0
    %v1584 = vcombine.low %v1505, %v1507
    %v1585 = vcombine.low %v1576, %v1578
    %v1587 = vunpack.c.l.s4 1983009808
    %v1588 = vunpack.c.0.s8 %v1587
    %v1589 = vlaneseq
    %v1590 = vshrl.u32 %v1589, 7
    %v1591 = vsub.s32 %v1588, %v1590
    %v1592 = vrot.slane %v1584, %v1591
    %v1594 = vunpack.c.l.s4 1983009808
    %v1595 = vunpack.c.0.s8 %v1594
    %v1596 = vlaneseq
    %v1597 = vshrl.u32 %v1596, 7
    %v1598 = vsub.s32 %v1595, %v1597
    %v1599 = vrot.slane %v1585, %v1598
    %v1600 = vcombine.low %v1592, %v1599
    %v1602 = vadd.f32 %v1437, %v1600
    %v1603 = vxor.u32 %v1602, 2147483648
    %v1604 = vmul.f32 %v1603, 1.442695
    %v1605 = vpow.pop %v1604
    %v1606 = vadd.f32 %v1605, 1.0
    %v1607 = vrcp.pop %v1606
    %v1608 = vmul.f32 1.0, %v1607
    %v1610 = vrot.slane %v1602, 2
    %v1612 = vxor.u32 %v1610, 2147483648
    %v1613 = vmul.f32 %v1612, 1.442695
    %v1614 = vpow.pop %v1613
    %v1615 = vadd.f32 %v1614, 1.0
    %v1616 = vrcp.pop %v1615
    %v1617 = vmul.f32 1.0, %v1616
    %v1618 = vrot.slane %v1602, 4
    %v1620 = vtanh.pop %v1618
    %v1621 = vrot.slane %v1602, 6
    %v1623 = vxor.u32 %v1621, 2147483648
    %v1624 = vmul.f32 %v1623, 1.442695
    %v1625 = vpow.pop %v1624
    %v1626 = vadd.f32 %v1625, 1.0
    %v1627 = vrcp.pop %v1626
    %v1628 = vmul.f32 1.0, %v1627
    %v1629 = vmul.f32 %v1617, %v1433
    %v1630 = vmul.f32 %v1608, %v1620
    %v1631 = vadd.f32 %v1629, %v1630
    %v1632 = vtanh.pop %v1631
    %v1633 = vmul.f32 %v1628, %v1632
    %s1634 = scalar_lea.vmem [#allocation2], 40
    %v1635 = vld [vmem:[%s1634] sm:$0xff]
    %1636 = vmatprep.subr.mxu0 %v582
    %1637 = vmatpush1.msra.mxu0 %v581
    %1638 = vmatprep.subr.mxu0 %v586
    %1639 = vmatpush1.msra.mxu0 %v585
    %1640 = vmatprep.subr.mxu0 %v590
    %1641 = vmatpush1.msra.mxu0 %v589
    %1642 = vmatprep.subr.mxu0 %v594
    %1643 = vmatpush1.msra.mxu0 %v593
    %1644 = vmatprep.subr.mxu0 %v598
    %1645 = vmatpush1.msra.mxu0 %v597
    %1646 = vmatprep.subr.mxu0 %v602
    %1647 = vmatpush1.msra.mxu0 %v601
    %1648 = vmatprep.subr.mxu0 %v606
    %1649 = vmatpush1.msra.mxu0 %v605
    %1650 = vmatprep.subr.mxu0 %v610
    %1651 = vmatpush1.msra.mxu0 %v609
    %1652 = vmatprep.subr.mxu0 %v614
    %1653 = vmatpush1.msra.mxu0 %v613
    %1654 = vmatprep.subr.mxu0 %v618
    %1655 = vmatpush1.msra.mxu0 %v617
    %1656 = vmatprep.subr.mxu0 %v622
    %1657 = vmatpush1.msra.mxu0 %v621
    %1658 = vmatprep.subr.mxu0 %v626
    %1659 = vmatpush1.msra.mxu0 %v625
    %1660 = vmatprep.subr.mxu0 %v630
    %1661 = vmatpush1.msra.mxu0 %v629
    %1662 = vmatprep.subr.mxu0 %v634
    %1663 = vmatpush1.msra.mxu0 %v633
    %1664 = vmatprep.subr.mxu0 %v638
    %1665 = vmatpush1.msra.mxu0 %v637
    %1666 = vmatprep.subr.mxu0 %v642
    %1667 = vmatpush1.msra.mxu0 %v641
    %1668 = vmatprep.subr.mxu0 0.0
    %1669 = vmatpush1.msra.mxu0 0.0
    %1670 = vmatprep.subr.mxu0 0.0
    %1671 = vmatpush1.msra.mxu0 0.0
    %1672 = vmatprep.subr.mxu0 0.0
    %1673 = vmatpush1.msra.mxu0 0.0
    %1674 = vmatprep.subr.mxu0 0.0
    %1675 = vmatpush1.msra.mxu0 0.0
    %1676 = vmatprep.subr.mxu0 0.0
    %1677 = vmatpush1.msra.mxu0 0.0
    %1678 = vmatprep.subr.mxu0 0.0
    %1679 = vmatpush1.msra.mxu0 0.0
    %1680 = vmatprep.subr.mxu0 0.0
    %1681 = vmatpush1.msra.mxu0 0.0
    %1682 = vmatprep.subr.mxu0 0.0
    %1683 = vmatpush1.msra.mxu0 0.0
    %1684 = vmatprep.subr.mxu0 0.0
    %1685 = vmatpush1.msra.mxu0 0.0
    %1686 = vmatprep.subr.mxu0 0.0
    %1687 = vmatpush1.msra.mxu0 0.0
    %1688 = vmatprep.subr.mxu0 0.0
    %1689 = vmatpush1.msra.mxu0 0.0
    %1690 = vmatprep.subr.mxu0 0.0
    %1691 = vmatpush1.msra.mxu0 0.0
    %1692 = vmatprep.subr.mxu0 0.0
    %1693 = vmatpush1.msra.mxu0 0.0
    %1694 = vmatprep.subr.mxu0 0.0
    %1695 = vmatpush1.msra.mxu0 0.0
    %1696 = vmatprep.subr.mxu0 0.0
    %1697 = vmatpush1.msra.mxu0 0.0
    %1698 = vmatprep.subr.mxu0 0.0
    %1699 = vmatpush1.msra.mxu0 0.0
    %1700 = vmatprep.mubr.f32.mxu0 0.0
    %1701 = vmatmul.mubr.f32.gmra.mrb[0].mxu0 %v1633
    %v1702 = vpop.f32.mrb[0].mxu0
    %v1703 = vadd.f32 0.0, %v1702
    %v1704 = vpop.f32.mrb[0].mxu0
    %v1705 = vadd.f32 0.0, %v1704
    %1706 = vdwg.mxu0
    %1707 = vmatprep.subr.mxu0 %v584
    %1708 = vmatpush1.msra.mxu0 %v583
    %1709 = vmatprep.subr.mxu0 %v588
    %1710 = vmatpush1.msra.mxu0 %v587
    %1711 = vmatprep.subr.mxu0 %v592
    %1712 = vmatpush1.msra.mxu0 %v591
    %1713 = vmatprep.subr.mxu0 %v596
    %1714 = vmatpush1.msra.mxu0 %v595
    %1715 = vmatprep.subr.mxu0 %v600
    %1716 = vmatpush1.msra.mxu0 %v599
    %1717 = vmatprep.subr.mxu0 %v604
    %1718 = vmatpush1.msra.mxu0 %v603
    %1719 = vmatprep.subr.mxu0 %v608
    %1720 = vmatpush1.msra.mxu0 %v607
    %1721 = vmatprep.subr.mxu0 %v612
    %1722 = vmatpush1.msra.mxu0 %v611
    %1723 = vmatprep.subr.mxu0 %v616
    %1724 = vmatpush1.msra.mxu0 %v615
    %1725 = vmatprep.subr.mxu0 %v620
    %1726 = vmatpush1.msra.mxu0 %v619
    %1727 = vmatprep.subr.mxu0 %v624
    %1728 = vmatpush1.msra.mxu0 %v623
    %1729 = vmatprep.subr.mxu0 %v628
    %1730 = vmatpush1.msra.mxu0 %v627
    %1731 = vmatprep.subr.mxu0 %v632
    %1732 = vmatpush1.msra.mxu0 %v631
    %1733 = vmatprep.subr.mxu0 %v636
    %1734 = vmatpush1.msra.mxu0 %v635
    %1735 = vmatprep.subr.mxu0 %v640
    %1736 = vmatpush1.msra.mxu0 %v639
    %1737 = vmatprep.subr.mxu0 %v644
    %1738 = vmatpush1.msra.mxu0 %v643
    %1739 = vmatprep.subr.mxu0 0.0
    %1740 = vmatpush1.msra.mxu0 0.0
    %1741 = vmatprep.subr.mxu0 0.0
    %1742 = vmatpush1.msra.mxu0 0.0
    %1743 = vmatprep.subr.mxu0 0.0
    %1744 = vmatpush1.msra.mxu0 0.0
    %1745 = vmatprep.subr.mxu0 0.0
    %1746 = vmatpush1.msra.mxu0 0.0
    %1747 = vmatprep.subr.mxu0 0.0
    %1748 = vmatpush1.msra.mxu0 0.0
    %1749 = vmatprep.subr.mxu0 0.0
    %1750 = vmatpush1.msra.mxu0 0.0
    %1751 = vmatprep.subr.mxu0 0.0
    %1752 = vmatpush1.msra.mxu0 0.0
    %1753 = vmatprep.subr.mxu0 0.0
    %1754 = vmatpush1.msra.mxu0 0.0
    %1755 = vmatprep.subr.mxu0 0.0
    %1756 = vmatpush1.msra.mxu0 0.0
    %1757 = vmatprep.subr.mxu0 0.0
    %1758 = vmatpush1.msra.mxu0 0.0
    %1759 = vmatprep.subr.mxu0 0.0
    %1760 = vmatpush1.msra.mxu0 0.0
    %1761 = vmatprep.subr.mxu0 0.0
    %1762 = vmatpush1.msra.mxu0 0.0
    %1763 = vmatprep.subr.mxu0 0.0
    %1764 = vmatpush1.msra.mxu0 0.0
    %1765 = vmatprep.subr.mxu0 0.0
    %1766 = vmatpush1.msra.mxu0 0.0
    %1767 = vmatprep.subr.mxu0 0.0
    %1768 = vmatpush1.msra.mxu0 0.0
    %1769 = vmatprep.subr.mxu0 0.0
    %1770 = vmatpush1.msra.mxu0 0.0
    %1771 = vmatprep.mubr.f32.mxu0 0.0
    %1772 = vmatmul.mubr.f32.gmra.mrb[0].mxu0 %v1633
    %v1773 = vpop.f32.mrb[0].mxu0
    %v1774 = vadd.f32 0.0, %v1773
    %v1775 = vpop.f32.mrb[0].mxu0
    %v1776 = vadd.f32 0.0, %v1775
    %1777 = vdwg.mxu0
    %v1782 = vcombine.low %v1703, %v1705
    %v1783 = vcombine.low %v1774, %v1776
    %v1785 = vunpack.c.l.s4 1983009808
    %v1786 = vunpack.c.0.s8 %v1785
    %v1787 = vlaneseq
    %v1788 = vshrl.u32 %v1787, 7
    %v1789 = vsub.s32 %v1786, %v1788
    %v1790 = vrot.slane %v1782, %v1789
    %v1792 = vunpack.c.l.s4 1983009808
    %v1793 = vunpack.c.0.s8 %v1792
    %v1794 = vlaneseq
    %v1795 = vshrl.u32 %v1794, 7
    %v1796 = vsub.s32 %v1793, %v1795
    %v1797 = vrot.slane %v1783, %v1796
    %v1798 = vcombine.low %v1790, %v1797
    %v1800 = vadd.f32 %v1635, %v1798
    %v1801 = vxor.u32 %v1800, 2147483648
    %v1802 = vmul.f32 %v1801, 1.442695
    %v1803 = vpow.pop %v1802
    %v1804 = vadd.f32 %v1803, 1.0
    %v1805 = vrcp.pop %v1804
    %v1806 = vmul.f32 1.0, %v1805
    %v1808 = vrot.slane %v1800, 2
    %v1810 = vxor.u32 %v1808, 2147483648
    %v1811 = vmul.f32 %v1810, 1.442695
    %v1812 = vpow.pop %v1811
    %v1813 = vadd.f32 %v1812, 1.0
    %v1814 = vrcp.pop %v1813
    %v1815 = vmul.f32 1.0, %v1814
    %v1816 = vrot.slane %v1800, 4
    %v1818 = vtanh.pop %v1816
    %v1819 = vrot.slane %v1800, 6
    %v1821 = vxor.u32 %v1819, 2147483648
    %v1822 = vmul.f32 %v1821, 1.442695
    %v1823 = vpow.pop %v1822
    %v1824 = vadd.f32 %v1823, 1.0
    %v1825 = vrcp.pop %v1824
    %v1826 = vmul.f32 1.0, %v1825
    %v1827 = vmul.f32 %v1815, %v1631
    %v1828 = vmul.f32 %v1806, %v1818
    %v1829 = vadd.f32 %v1827, %v1828
    %v1830 = vtanh.pop %v1829
    %v1831 = vmul.f32 %v1826, %v1830
    %s1832 = scalar_lea.vmem [#allocation2], 48
    %v1833 = vld [vmem:[%s1832] sm:$0xff]
    %1834 = vmatprep.subr.mxu0 %v582
    %1835 = vmatpush1.msra.mxu0 %v581
    %1836 = vmatprep.subr.mxu0 %v586
    %1837 = vmatpush1.msra.mxu0 %v585
    %1838 = vmatprep.subr.mxu0 %v590
    %1839 = vmatpush1.msra.mxu0 %v589
    %1840 = vmatprep.subr.mxu0 %v594
    %1841 = vmatpush1.msra.mxu0 %v593
    %1842 = vmatprep.subr.mxu0 %v598
    %1843 = vmatpush1.msra.mxu0 %v597
    %1844 = vmatprep.subr.mxu0 %v602
    %1845 = vmatpush1.msra.mxu0 %v601
    %1846 = vmatprep.subr.mxu0 %v606
    %1847 = vmatpush1.msra.mxu0 %v605
    %1848 = vmatprep.subr.mxu0 %v610
    %1849 = vmatpush1.msra.mxu0 %v609
    %1850 = vmatprep.subr.mxu0 %v614
    %1851 = vmatpush1.msra.mxu0 %v613
    %1852 = vmatprep.subr.mxu0 %v618
    %1853 = vmatpush1.msra.mxu0 %v617
    %1854 = vmatprep.subr.mxu0 %v622
    %1855 = vmatpush1.msra.mxu0 %v621
    %1856 = vmatprep.subr.mxu0 %v626
    %1857 = vmatpush1.msra.mxu0 %v625
    %1858 = vmatprep.subr.mxu0 %v630
    %1859 = vmatpush1.msra.mxu0 %v629
    %1860 = vmatprep.subr.mxu0 %v634
    %1861 = vmatpush1.msra.mxu0 %v633
    %1862 = vmatprep.subr.mxu0 %v638
    %1863 = vmatpush1.msra.mxu0 %v637
    %1864 = vmatprep.subr.mxu0 %v642
    %1865 = vmatpush1.msra.mxu0 %v641
    %1866 = vmatprep.subr.mxu0 0.0
    %1867 = vmatpush1.msra.mxu0 0.0
    %1868 = vmatprep.subr.mxu0 0.0
    %1869 = vmatpush1.msra.mxu0 0.0
    %1870 = vmatprep.subr.mxu0 0.0
    %1871 = vmatpush1.msra.mxu0 0.0
    %1872 = vmatprep.subr.mxu0 0.0
    %1873 = vmatpush1.msra.mxu0 0.0
    %1874 = vmatprep.subr.mxu0 0.0
    %1875 = vmatpush1.msra.mxu0 0.0
    %1876 = vmatprep.subr.mxu0 0.0
    %1877 = vmatpush1.msra.mxu0 0.0
    %1878 = vmatprep.subr.mxu0 0.0
    %1879 = vmatpush1.msra.mxu0 0.0
    %1880 = vmatprep.subr.mxu0 0.0
    %1881 = vmatpush1.msra.mxu0 0.0
    %1882 = vmatprep.subr.mxu0 0.0
    %1883 = vmatpush1.msra.mxu0 0.0
    %1884 = vmatprep.subr.mxu0 0.0
    %1885 = vmatpush1.msra.mxu0 0.0
    %1886 = vmatprep.subr.mxu0 0.0
    %1887 = vmatpush1.msra.mxu0 0.0
    %1888 = vmatprep.subr.mxu0 0.0
    %1889 = vmatpush1.msra.mxu0 0.0
    %1890 = vmatprep.subr.mxu0 0.0
    %1891 = vmatpush1.msra.mxu0 0.0
    %1892 = vmatprep.subr.mxu0 0.0
    %1893 = vmatpush1.msra.mxu0 0.0
    %1894 = vmatprep.subr.mxu0 0.0
    %1895 = vmatpush1.msra.mxu0 0.0
    %1896 = vmatprep.subr.mxu0 0.0
    %1897 = vmatpush1.msra.mxu0 0.0
    %1898 = vmatprep.mubr.f32.mxu0 0.0
    %1899 = vmatmul.mubr.f32.gmra.mrb[0].mxu0 %v1831
    %v1900 = vpop.f32.mrb[0].mxu0
    %v1901 = vadd.f32 0.0, %v1900
    %v1902 = vpop.f32.mrb[0].mxu0
    %v1903 = vadd.f32 0.0, %v1902
    %1904 = vdwg.mxu0
    %1905 = vmatprep.subr.mxu0 %v584
    %1906 = vmatpush1.msra.mxu0 %v583
    %1907 = vmatprep.subr.mxu0 %v588
    %1908 = vmatpush1.msra.mxu0 %v587
    %1909 = vmatprep.subr.mxu0 %v592
    %1910 = vmatpush1.msra.mxu0 %v591
    %1911 = vmatprep.subr.mxu0 %v596
    %1912 = vmatpush1.msra.mxu0 %v595
    %1913 = vmatprep.subr.mxu0 %v600
    %1914 = vmatpush1.msra.mxu0 %v599
    %1915 = vmatprep.subr.mxu0 %v604
    %1916 = vmatpush1.msra.mxu0 %v603
    %1917 = vmatprep.subr.mxu0 %v608
    %1918 = vmatpush1.msra.mxu0 %v607
    %1919 = vmatprep.subr.mxu0 %v612
    %1920 = vmatpush1.msra.mxu0 %v611
    %1921 = vmatprep.subr.mxu0 %v616
    %1922 = vmatpush1.msra.mxu0 %v615
    %1923 = vmatprep.subr.mxu0 %v620
    %1924 = vmatpush1.msra.mxu0 %v619
    %1925 = vmatprep.subr.mxu0 %v624
    %1926 = vmatpush1.msra.mxu0 %v623
    %1927 = vmatprep.subr.mxu0 %v628
    %1928 = vmatpush1.msra.mxu0 %v627
    %1929 = vmatprep.subr.mxu0 %v632
    %1930 = vmatpush1.msra.mxu0 %v631
    %1931 = vmatprep.subr.mxu0 %v636
    %1932 = vmatpush1.msra.mxu0 %v635
    %1933 = vmatprep.subr.mxu0 %v640
    %1934 = vmatpush1.msra.mxu0 %v639
    %1935 = vmatprep.subr.mxu0 %v644
    %1936 = vmatpush1.msra.mxu0 %v643
    %1937 = vmatprep.subr.mxu0 0.0
    %1938 = vmatpush1.msra.mxu0 0.0
    %1939 = vmatprep.subr.mxu0 0.0
    %1940 = vmatpush1.msra.mxu0 0.0
    %1941 = vmatprep.subr.mxu0 0.0
    %1942 = vmatpush1.msra.mxu0 0.0
    %1943 = vmatprep.subr.mxu0 0.0
    %1944 = vmatpush1.msra.mxu0 0.0
    %1945 = vmatprep.subr.mxu0 0.0
    %1946 = vmatpush1.msra.mxu0 0.0
    %1947 = vmatprep.subr.mxu0 0.0
    %1948 = vmatpush1.msra.mxu0 0.0
    %1949 = vmatprep.subr.mxu0 0.0
    %1950 = vmatpush1.msra.mxu0 0.0
    %1951 = vmatprep.subr.mxu0 0.0
    %1952 = vmatpush1.msra.mxu0 0.0
    %1953 = vmatprep.subr.mxu0 0.0
    %1954 = vmatpush1.msra.mxu0 0.0
    %1955 = vmatprep.subr.mxu0 0.0
    %1956 = vmatpush1.msra.mxu0 0.0
    %1957 = vmatprep.subr.mxu0 0.0
    %1958 = vmatpush1.msra.mxu0 0.0
    %1959 = vmatprep.subr.mxu0 0.0
    %1960 = vmatpush1.msra.mxu0 0.0
    %1961 = vmatprep.subr.mxu0 0.0
    %1962 = vmatpush1.msra.mxu0 0.0
    %1963 = vmatprep.subr.mxu0 0.0
    %1964 = vmatpush1.msra.mxu0 0.0
    %1965 = vmatprep.subr.mxu0 0.0
    %1966 = vmatpush1.msra.mxu0 0.0
    %1967 = vmatprep.subr.mxu0 0.0
    %1968 = vmatpush1.msra.mxu0 0.0
    %1969 = vmatprep.mubr.f32.mxu0 0.0
    %1970 = vmatmul.mubr.f32.gmra.mrb[0].mxu0 %v1831
    %v1971 = vpop.f32.mrb[0].mxu0
    %v1972 = vadd.f32 0.0, %v1971
    %v1973 = vpop.f32.mrb[0].mxu0
    %v1974 = vadd.f32 0.0, %v1973
    %1975 = vdwg.mxu0
    %v1980 = vcombine.low %v1901, %v1903
    %v1981 = vcombine.low %v1972, %v1974
    %v1983 = vunpack.c.l.s4 1983009808
    %v1984 = vunpack.c.0.s8 %v1983
    %v1985 = vlaneseq
    %v1986 = vshrl.u32 %v1985, 7
    %v1987 = vsub.s32 %v1984, %v1986
    %v1988 = vrot.slane %v1980, %v1987
    %v1990 = vunpack.c.l.s4 1983009808
    %v1991 = vunpack.c.0.s8 %v1990
    %v1992 = vlaneseq
    %v1993 = vshrl.u32 %v1992, 7
    %v1994 = vsub.s32 %v1991, %v1993
    %v1995 = vrot.slane %v1981, %v1994
    %v1996 = vcombine.low %v1988, %v1995
    %v1998 = vadd.f32 %v1833, %v1996
    %v1999 = vxor.u32 %v1998, 2147483648
    %v2000 = vmul.f32 %v1999, 1.442695
    %v2001 = vpow.pop %v2000
    %v2002 = vadd.f32 %v2001, 1.0
    %v2003 = vrcp.pop %v2002
    %v2004 = vmul.f32 1.0, %v2003
    %v2006 = vrot.slane %v1998, 2
    %v2008 = vxor.u32 %v2006, 2147483648
    %v2009 = vmul.f32 %v2008, 1.442695
    %v2010 = vpow.pop %v2009
    %v2011 = vadd.f32 %v2010, 1.0
    %v2012 = vrcp.pop %v2011
    %v2013 = vmul.f32 1.0, %v2012
    %v2014 = vrot.slane %v1998, 4
    %v2016 = vtanh.pop %v2014
    %v2017 = vrot.slane %v1998, 6
    %v2019 = vxor.u32 %v2017, 2147483648
    %v2020 = vmul.f32 %v2019, 1.442695
    %v2021 = vpow.pop %v2020
    %v2022 = vadd.f32 %v2021, 1.0
    %v2023 = vrcp.pop %v2022
    %v2024 = vmul.f32 1.0, %v2023
    %v2025 = vmul.f32 %v2013, %v1829
    %v2026 = vmul.f32 %v2004, %v2016
    %v2027 = vadd.f32 %v2025, %v2026
    %v2028 = vtanh.pop %v2027
    %v2029 = vmul.f32 %v2024, %v2028
    %s2030 = scalar_lea.vmem [#allocation2], 56
    %v2031 = vld [vmem:[%s2030] sm:$0xff]
    %2032 = vmatprep.subr.mxu0 %v582
    %2033 = vmatpush1.msra.mxu0 %v581
    %2034 = vmatprep.subr.mxu0 %v586
    %2035 = vmatpush1.msra.mxu0 %v585
    %2036 = vmatprep.subr.mxu0 %v590
    %2037 = vmatpush1.msra.mxu0 %v589
    %2038 = vmatprep.subr.mxu0 %v594
    %2039 = vmatpush1.msra.mxu0 %v593
    %2040 = vmatprep.subr.mxu0 %v598
    %2041 = vmatpush1.msra.mxu0 %v597
    %2042 = vmatprep.subr.mxu0 %v602
    %2043 = vmatpush1.msra.mxu0 %v601
    %2044 = vmatprep.subr.mxu0 %v606
    %2045 = vmatpush1.msra.mxu0 %v605
    %2046 = vmatprep.subr.mxu0 %v610
    %2047 = vmatpush1.msra.mxu0 %v609
    %2048 = vmatprep.subr.mxu0 %v614
    %2049 = vmatpush1.msra.mxu0 %v613
    %2050 = vmatprep.subr.mxu0 %v618
    %2051 = vmatpush1.msra.mxu0 %v617
    %2052 = vmatprep.subr.mxu0 %v622
    %2053 = vmatpush1.msra.mxu0 %v621
    %2054 = vmatprep.subr.mxu0 %v626
    %2055 = vmatpush1.msra.mxu0 %v625
    %2056 = vmatprep.subr.mxu0 %v630
    %2057 = vmatpush1.msra.mxu0 %v629
    %2058 = vmatprep.subr.mxu0 %v634
    %2059 = vmatpush1.msra.mxu0 %v633
    %2060 = vmatprep.subr.mxu0 %v638
    %2061 = vmatpush1.msra.mxu0 %v637
    %2062 = vmatprep.subr.mxu0 %v642
    %2063 = vmatpush1.msra.mxu0 %v641
    %2064 = vmatprep.subr.mxu0 0.0
    %2065 = vmatpush1.msra.mxu0 0.0
    %2066 = vmatprep.subr.mxu0 0.0
    %2067 = vmatpush1.msra.mxu0 0.0
    %2068 = vmatprep.subr.mxu0 0.0
    %2069 = vmatpush1.msra.mxu0 0.0
    %2070 = vmatprep.subr.mxu0 0.0
    %2071 = vmatpush1.msra.mxu0 0.0
    %2072 = vmatprep.subr.mxu0 0.0
    %2073 = vmatpush1.msra.mxu0 0.0
    %2074 = vmatprep.subr.mxu0 0.0
    %2075 = vmatpush1.msra.mxu0 0.0
    %2076 = vmatprep.subr.mxu0 0.0
    %2077 = vmatpush1.msra.mxu0 0.0
    %2078 = vmatprep.subr.mxu0 0.0
    %2079 = vmatpush1.msra.mxu0 0.0
    %2080 = vmatprep.subr.mxu0 0.0
    %2081 = vmatpush1.msra.mxu0 0.0
    %2082 = vmatprep.subr.mxu0 0.0
    %2083 = vmatpush1.msra.mxu0 0.0
    %2084 = vmatprep.subr.mxu0 0.0
    %2085 = vmatpush1.msra.mxu0 0.0
    %2086 = vmatprep.subr.mxu0 0.0
    %2087 = vmatpush1.msra.mxu0 0.0
    %2088 = vmatprep.subr.mxu0 0.0
    %2089 = vmatpush1.msra.mxu0 0.0
    %2090 = vmatprep.subr.mxu0 0.0
    %2091 = vmatpush1.msra.mxu0 0.0
    %2092 = vmatprep.subr.mxu0 0.0
    %2093 = vmatpush1.msra.mxu0 0.0
    %2094 = vmatprep.subr.mxu0 0.0
    %2095 = vmatpush1.msra.mxu0 0.0
    %2096 = vmatprep.mubr.f32.mxu0 0.0
    %2097 = vmatmul.mubr.f32.gmra.mrb[0].mxu0 %v2029
    %v2098 = vpop.f32.mrb[0].mxu0
    %v2099 = vadd.f32 0.0, %v2098
    %v2100 = vpop.f32.mrb[0].mxu0
    %v2101 = vadd.f32 0.0, %v2100
    %2102 = vdwg.mxu0
    %2103 = vmatprep.subr.mxu0 %v584
    %2104 = vmatpush1.msra.mxu0 %v583
    %2105 = vmatprep.subr.mxu0 %v588
    %2106 = vmatpush1.msra.mxu0 %v587
    %2107 = vmatprep.subr.mxu0 %v592
    %2108 = vmatpush1.msra.mxu0 %v591
    %2109 = vmatprep.subr.mxu0 %v596
    %2110 = vmatpush1.msra.mxu0 %v595
    %2111 = vmatprep.subr.mxu0 %v600
    %2112 = vmatpush1.msra.mxu0 %v599
    %2113 = vmatprep.subr.mxu0 %v604
    %2114 = vmatpush1.msra.mxu0 %v603
    %2115 = vmatprep.subr.mxu0 %v608
    %2116 = vmatpush1.msra.mxu0 %v607
    %2117 = vmatprep.subr.mxu0 %v612
    %2118 = vmatpush1.msra.mxu0 %v611
    %2119 = vmatprep.subr.mxu0 %v616
    %2120 = vmatpush1.msra.mxu0 %v615
    %2121 = vmatprep.subr.mxu0 %v620
    %2122 = vmatpush1.msra.mxu0 %v619
    %2123 = vmatprep.subr.mxu0 %v624
    %2124 = vmatpush1.msra.mxu0 %v623
    %2125 = vmatprep.subr.mxu0 %v628
    %2126 = vmatpush1.msra.mxu0 %v627
    %2127 = vmatprep.subr.mxu0 %v632
    %2128 = vmatpush1.msra.mxu0 %v631
    %2129 = vmatprep.subr.mxu0 %v636
    %2130 = vmatpush1.msra.mxu0 %v635
    %2131 = vmatprep.subr.mxu0 %v640
    %2132 = vmatpush1.msra.mxu0 %v639
    %2133 = vmatprep.subr.mxu0 %v644
    %2134 = vmatpush1.msra.mxu0 %v643
    %2135 = vmatprep.subr.mxu0 0.0
    %2136 = vmatpush1.msra.mxu0 0.0
    %2137 = vmatprep.subr.mxu0 0.0
    %2138 = vmatpush1.msra.mxu0 0.0
    %2139 = vmatprep.subr.mxu0 0.0
    %2140 = vmatpush1.msra.mxu0 0.0
    %2141 = vmatprep.subr.mxu0 0.0
    %2142 = vmatpush1.msra.mxu0 0.0
    %2143 = vmatprep.subr.mxu0 0.0
    %2144 = vmatpush1.msra.mxu0 0.0
    %2145 = vmatprep.subr.mxu0 0.0
    %2146 = vmatpush1.msra.mxu0 0.0
    %2147 = vmatprep.subr.mxu0 0.0
    %2148 = vmatpush1.msra.mxu0 0.0
    %2149 = vmatprep.subr.mxu0 0.0
    %2150 = vmatpush1.msra.mxu0 0.0
    %2151 = vmatprep.subr.mxu0 0.0
    %2152 = vmatpush1.msra.mxu0 0.0
    %2153 = vmatprep.subr.mxu0 0.0
    %2154 = vmatpush1.msra.mxu0 0.0
    %2155 = vmatprep.subr.mxu0 0.0
    %2156 = vmatpush1.msra.mxu0 0.0
    %2157 = vmatprep.subr.mxu0 0.0
    %2158 = vmatpush1.msra.mxu0 0.0
    %2159 = vmatprep.subr.mxu0 0.0
    %2160 = vmatpush1.msra.mxu0 0.0
    %2161 = vmatprep.subr.mxu0 0.0
    %2162 = vmatpush1.msra.mxu0 0.0
    %2163 = vmatprep.subr.mxu0 0.0
    %2164 = vmatpush1.msra.mxu0 0.0
    %2165 = vmatprep.subr.mxu0 0.0
    %2166 = vmatpush1.msra.mxu0 0.0
    %2167 = vmatprep.mubr.f32.mxu0 0.0
    %2168 = vmatmul.mubr.f32.gmra.mrb[0].mxu0 %v2029
    %v2169 = vpop.f32.mrb[0].mxu0
    %v2170 = vadd.f32 0.0, %v2169
    %v2171 = vpop.f32.mrb[0].mxu0
    %v2172 = vadd.f32 0.0, %v2171
    %2173 = vdwg.mxu0
    %v2178 = vcombine.low %v2099, %v2101
    %v2179 = vcombine.low %v2170, %v2172
    %v2181 = vunpack.c.l.s4 1983009808
    %v2182 = vunpack.c.0.s8 %v2181
    %v2183 = vlaneseq
    %v2184 = vshrl.u32 %v2183, 7
    %v2185 = vsub.s32 %v2182, %v2184
    %v2186 = vrot.slane %v2178, %v2185
    %v2188 = vunpack.c.l.s4 1983009808
    %v2189 = vunpack.c.0.s8 %v2188
    %v2190 = vlaneseq
    %v2191 = vshrl.u32 %v2190, 7
    %v2192 = vsub.s32 %v2189, %v2191
    %v2193 = vrot.slane %v2179, %v2192
    %v2194 = vcombine.low %v2186, %v2193
    %v2196 = vadd.f32 %v2031, %v2194
    %v2197 = vxor.u32 %v2196, 2147483648
    %v2198 = vmul.f32 %v2197, 1.442695
    %v2199 = vpow.pop %v2198
    %v2200 = vadd.f32 %v2199, 1.0
    %v2201 = vrcp.pop %v2200
    %v2202 = vmul.f32 1.0, %v2201
    %v2204 = vrot.slane %v2196, 2
    %v2206 = vxor.u32 %v2204, 2147483648
    %v2207 = vmul.f32 %v2206, 1.442695
    %v2208 = vpow.pop %v2207
    %v2209 = vadd.f32 %v2208, 1.0
    %v2210 = vrcp.pop %v2209
    %v2211 = vmul.f32 1.0, %v2210
    %v2212 = vrot.slane %v2196, 4
    %v2214 = vtanh.pop %v2212
    %v2215 = vrot.slane %v2196, 6
    %v2217 = vxor.u32 %v2215, 2147483648
    %v2218 = vmul.f32 %v2217, 1.442695
    %v2219 = vpow.pop %v2218
    %v2220 = vadd.f32 %v2219, 1.0
    %v2221 = vrcp.pop %v2220
    %v2222 = vmul.f32 1.0, %v2221
    %v2223 = vmul.f32 %v2211, %v2027
    %v2224 = vmul.f32 %v2202, %v2214
    %v2225 = vadd.f32 %v2223, %v2224
    %v2226 = vtanh.pop %v2225
    %v2227 = vmul.f32 %v2222, %v2226
    %v2228 = vld [vmem:[%s5] sm:$0xff]
    %s2229 = scalar_lea.vmem %s0, 14
    %v2230 = vld [vmem:[%s2229] sm:$0x3]
    %2232 = vset.pattern.permute.xlu0 0
    %2233 = vperm.xlu0 %2232, %v2230
    %v2234 = vpop.permute.xlu0 %2233
    %v2237 = vlaneseq
    %v2238 = vshrl.u32 %v2237, 7
    %v2239 = vsub.s32 0, %v2238
    %v2240 = vrot.slane %v2228, %v2239
    %v2241 = vlaneseq
    %v2242 = vshrl.u32 %v2241, 7
    %v2243 = vsub.s32 4, %v2242
    %v2244 = vrot.slane %v2228, %v2243
    %v2245 = vlaneseq
    %v2246 = vshrl.u32 %v2245, 7
    %v2247 = vsub.s32 6, %v2246
    %v2248 = vrot.slane %v2228, %v2247
    %v2252 = vlaneseq
    %v2253 = vshrl.u32 %v2252, 7
    %v2254 = vsub.s32 0, %v2253
    %v2255 = vrot.slane %v2240, %v2254
    %v2256 = vlaneseq
    %v2257 = vshrl.u32 %v2256, 7
    %v2258 = vsub.s32 0, %v2257
    %v2259 = vrot.slane %v2244, %v2258
    %v2260 = vlaneseq
    %v2261 = vshrl.u32 %v2260, 7
    %v2262 = vsub.s32 0, %v2261
    %v2263 = vrot.slane %v2248, %v2262
    %v2264 = vmul.f32 %v2234, %v2255
    %v2265 = vmul.f32 %v2234, %v2259
    %v2266 = vmul.f32 %v2234, %v2263
    %s2267 = scalar_lea.vmem %s1, 14
    %v2268 = vld [vmem:[%s2267] sm:$0x3]
    %2270 = vset.pattern.permute.xlu0 0
    %2271 = vperm.xlu0 %2270, %v2268
    %v2272 = vpop.permute.xlu0 %2271
    %v2274 = vlaneseq
    %v2275 = vshrl.u32 %v2274, 7
    %v2276 = vsub.s32 1, %v2275
    %v2277 = vrot.slane %v2228, %v2276
    %v2278 = vlaneseq
    %v2279 = vshrl.u32 %v2278, 7
    %v2280 = vsub.s32 5, %v2279
    %v2281 = vrot.slane %v2228, %v2280
    %v2282 = vlaneseq
    %v2283 = vshrl.u32 %v2282, 7
    %v2284 = vsub.s32 7, %v2283
    %v2285 = vrot.slane %v2228, %v2284
    %v2289 = vlaneseq
    %v2290 = vshrl.u32 %v2289, 7
    %v2291 = vsub.s32 1, %v2290
    %v2292 = vrot.slane %v2277, %v2291
    %v2293 = vlaneseq
    %v2294 = vshrl.u32 %v2293, 7
    %v2295 = vsub.s32 1, %v2294
    %v2296 = vrot.slane %v2281, %v2295
    %v2297 = vlaneseq
    %v2298 = vshrl.u32 %v2297, 7
    %v2299 = vsub.s32 1, %v2298
    %v2300 = vrot.slane %v2285, %v2299
    %v2301 = vmul.f32 %v2272, %v2292
    %v2302 = vmul.f32 %v2272, %v2296
    %v2303 = vmul.f32 %v2272, %v2300
    %v2304 = vadd.f32 %v2264, %v2301
    %v2305 = vadd.f32 %v2265, %v2302
    %v2306 = vadd.f32 %v2266, %v2303
    %v2307 = vld [vmem:[%s6] sm:$0xf]
    %v2309 = vlaneseq
    %v2310 = vshrl.u32 %v2309, 7
    %v2311 = vsub.s32 0, %v2310
    %v2312 = vrot.slane %v2307, %v2311
    %v2313 = vlaneseq
    %v2314 = vshrl.u32 %v2313, 7
    %v2315 = vsub.s32 2, %v2314
    %v2316 = vrot.slane %v2307, %v2315
    %v2317 = vlaneseq
    %v2318 = vshrl.u32 %v2317, 7
    %v2319 = vsub.s32 3, %v2318
    %v2320 = vrot.slane %v2307, %v2319
    %v2324 = vadd.f32 %v2304, %v2312
    %v2325 = vadd.f32 %v2305, %v2316
    %v2326 = vadd.f32 %v2306, %v2320
    %v2327 = vxor.u32 %v2324, 2147483648
    %v2328 = vmul.f32 %v2327, 1.442695
    %v2329 = vpow.pop %v2328
    %v2330 = vadd.f32 %v2329, 1.0
    %v2331 = vrcp.pop %v2330
    %v2332 = vmul.f32 1.0, %v2331
    %v2333 = vtanh.pop %v2325
    %v2334 = vxor.u32 %v2326, 2147483648
    %v2335 = vmul.f32 %v2334, 1.442695
    %v2336 = vpow.pop %v2335
    %v2337 = vadd.f32 %v2336, 1.0
    %v2338 = vrcp.pop %v2337
    %v2339 = vmul.f32 1.0, %v2338
    %v2340 = vmul.f32 %v2332, %v2333
    %v2341 = vtanh.pop %v2340
    %v2342 = vmul.f32 %v2339, %v2341
    %v2343 = vld [vmem:[#allocation6] sm:$0xff]
    %v2344 = vld [vmem:[#allocation6 + $0x8] sm:$0xff]
    %v2345 = vld [vmem:[#allocation6 + $0x10] sm:$0xff]
    %v2346 = vld [vmem:[#allocation6 + $0x18] sm:$0xff]
    %v2347 = vld [vmem:[#allocation6 + $0x20] sm:$0xff]
    %v2348 = vld [vmem:[#allocation6 + $0x28] sm:$0xff]
    %v2349 = vld [vmem:[#allocation6 + $0x30] sm:$0xff]
    %v2350 = vld [vmem:[#allocation6 + $0x38] sm:$0xff]
    %v2351 = vld [vmem:[#allocation6 + $0x40] sm:$0xff]
    %v2352 = vld [vmem:[#allocation6 + $0x48] sm:$0xff]
    %v2353 = vld [vmem:[#allocation6 + $0x50] sm:$0xff]
    %v2354 = vld [vmem:[#allocation6 + $0x58] sm:$0xff]
    %v2355 = vld [vmem:[#allocation6 + $0x60] sm:$0xff]
    %v2356 = vld [vmem:[#allocation6 + $0x68] sm:$0xff]
    %v2357 = vld [vmem:[#allocation6 + $0x70] sm:$0xff]
    %v2358 = vld [vmem:[#allocation6 + $0x78] sm:$0xff]
    %v2359 = vld [vmem:[#allocation8] sm:$0xff]
    %v2360 = vld [vmem:[#allocation8 + $0x8] sm:$0xff]
    %v2361 = vld [vmem:[#allocation8 + $0x10] sm:$0xff]
    %v2362 = vld [vmem:[#allocation8 + $0x18] sm:$0xff]
    %v2363 = vld [vmem:[#allocation8 + $0x20] sm:$0xff]
    %v2364 = vld [vmem:[#allocation8 + $0x28] sm:$0xff]
    %v2365 = vld [vmem:[#allocation8 + $0x30] sm:$0xff]
    %v2366 = vld [vmem:[#allocation8 + $0x38] sm:$0xff]
    %v2367 = vld [vmem:[#allocation8 + $0x40] sm:$0xff]
    %v2368 = vld [vmem:[#allocation8 + $0x48] sm:$0xff]
    %v2369 = vld [vmem:[#allocation8 + $0x50] sm:$0xff]
    %v2370 = vld [vmem:[#allocation8 + $0x58] sm:$0xff]
    %v2371 = vld [vmem:[#allocation8 + $0x60] sm:$0xff]
    %v2372 = vld [vmem:[#allocation8 + $0x68] sm:$0xff]
    %v2373 = vld [vmem:[#allocation8 + $0x70] sm:$0xff]
    %v2374 = vld [vmem:[#allocation8 + $0x78] sm:$0xff]
    %2375 = vmatprep.subr.mxu0 0.0
    %2376 = vmatpush1.msra.mxu0 %v2359
    %2377 = vmatprep.subr.mxu0 0.0
    %2378 = vmatpush1.msra.mxu0 %v2360
    %2379 = vmatprep.subr.mxu0 0.0
    %2380 = vmatpush1.msra.mxu0 %v2361
    %2381 = vmatprep.subr.mxu0 0.0
    %2382 = vmatpush1.msra.mxu0 %v2362
    %2383 = vmatprep.subr.mxu0 0.0
    %2384 = vmatpush1.msra.mxu0 %v2363
    %2385 = vmatprep.subr.mxu0 0.0
    %2386 = vmatpush1.msra.mxu0 %v2364
    %2387 = vmatprep.subr.mxu0 0.0
    %2388 = vmatpush1.msra.mxu0 %v2365
    %2389 = vmatprep.subr.mxu0 0.0
    %2390 = vmatpush1.msra.mxu0 %v2366
    %2391 = vmatprep.subr.mxu0 0.0
    %2392 = vmatpush1.msra.mxu0 %v2367
    %2393 = vmatprep.subr.mxu0 0.0
    %2394 = vmatpush1.msra.mxu0 %v2368
    %2395 = vmatprep.subr.mxu0 0.0
    %2396 = vmatpush1.msra.mxu0 %v2369
    %2397 = vmatprep.subr.mxu0 0.0
    %2398 = vmatpush1.msra.mxu0 %v2370
    %2399 = vmatprep.subr.mxu0 0.0
    %2400 = vmatpush1.msra.mxu0 %v2371
    %2401 = vmatprep.subr.mxu0 0.0
    %2402 = vmatpush1.msra.mxu0 %v2372
    %2403 = vmatprep.subr.mxu0 0.0
    %2404 = vmatpush1.msra.mxu0 %v2373
    %2405 = vmatprep.subr.mxu0 0.0
    %2406 = vmatpush1.msra.mxu0 %v2374
    %2407 = vmatprep.subr.mxu0 0.0
    %2408 = vmatpush1.msra.mxu0 0.0
    %2409 = vmatprep.subr.mxu0 0.0
    %2410 = vmatpush1.msra.mxu0 0.0
    %2411 = vmatprep.subr.mxu0 0.0
    %2412 = vmatpush1.msra.mxu0 0.0
    %2413 = vmatprep.subr.mxu0 0.0
    %2414 = vmatpush1.msra.mxu0 0.0
    %2415 = vmatprep.subr.mxu0 0.0
    %2416 = vmatpush1.msra.mxu0 0.0
    %2417 = vmatprep.subr.mxu0 0.0
    %2418 = vmatpush1.msra.mxu0 0.0
    %2419 = vmatprep.subr.mxu0 0.0
    %2420 = vmatpush1.msra.mxu0 0.0
    %2421 = vmatprep.subr.mxu0 0.0
    %2422 = vmatpush1.msra.mxu0 0.0
    %2423 = vmatprep.subr.mxu0 0.0
    %2424 = vmatpush1.msra.mxu0 0.0
    %2425 = vmatprep.subr.mxu0 0.0
    %2426 = vmatpush1.msra.mxu0 0.0
    %2427 = vmatprep.subr.mxu0 0.0
    %2428 = vmatpush1.msra.mxu0 0.0
    %2429 = vmatprep.subr.mxu0 0.0
    %2430 = vmatpush1.msra.mxu0 0.0
    %2431 = vmatprep.subr.mxu0 0.0
    %2432 = vmatpush1.msra.mxu0 0.0
    %2433 = vmatprep.subr.mxu0 0.0
    %2434 = vmatpush1.msra.mxu0 0.0
    %2435 = vmatprep.subr.mxu0 0.0
    %2436 = vmatpush1.msra.mxu0 0.0
    %2437 = vmatprep.subr.mxu0 0.0
    %2438 = vmatpush1.msra.mxu0 0.0
    %2439 = vmatprep.mubr.f32.mxu0 0.0
    %2440 = vmatmul.mubr.f32.gmra.mrb[0].mxu0 %v2342
    %v2441 = vpop.f32.mrb[0].mxu0
    %v2442 = vadd.f32 0.0, %v2441
    %v2443 = vpop.f32.mrb[0].mxu0
    %2444 = vdwg.mxu0
    %2445 = vmatprep.subr.mxu0 0.0
    %2446 = vmatpush1.msra.mxu0 %v2343
    %2447 = vmatprep.subr.mxu0 0.0
    %2448 = vmatpush1.msra.mxu0 %v2344
    %2449 = vmatprep.subr.mxu0 0.0
    %2450 = vmatpush1.msra.mxu0 %v2345
    %2451 = vmatprep.subr.mxu0 0.0
    %2452 = vmatpush1.msra.mxu0 %v2346
    %2453 = vmatprep.subr.mxu0 0.0
    %2454 = vmatpush1.msra.mxu0 %v2347
    %2455 = vmatprep.subr.mxu0 0.0
    %2456 = vmatpush1.msra.mxu0 %v2348
    %2457 = vmatprep.subr.mxu0 0.0
    %2458 = vmatpush1.msra.mxu0 %v2349
    %2459 = vmatprep.subr.mxu0 0.0
    %2460 = vmatpush1.msra.mxu0 %v2350
    %2461 = vmatprep.subr.mxu0 0.0
    %2462 = vmatpush1.msra.mxu0 %v2351
    %2463 = vmatprep.subr.mxu0 0.0
    %2464 = vmatpush1.msra.mxu0 %v2352
    %2465 = vmatprep.subr.mxu0 0.0
    %2466 = vmatpush1.msra.mxu0 %v2353
    %2467 = vmatprep.subr.mxu0 0.0
    %2468 = vmatpush1.msra.mxu0 %v2354
    %2469 = vmatprep.subr.mxu0 0.0
    %2470 = vmatpush1.msra.mxu0 %v2355
    %2471 = vmatprep.subr.mxu0 0.0
    %2472 = vmatpush1.msra.mxu0 %v2356
    %2473 = vmatprep.subr.mxu0 0.0
    %2474 = vmatpush1.msra.mxu0 %v2357
    %2475 = vmatprep.subr.mxu0 0.0
    %2476 = vmatpush1.msra.mxu0 %v2358
    %2477 = vmatprep.subr.mxu0 0.0
    %2478 = vmatpush1.msra.mxu0 0.0
    %2479 = vmatprep.subr.mxu0 0.0
    %2480 = vmatpush1.msra.mxu0 0.0
    %2481 = vmatprep.subr.mxu0 0.0
    %2482 = vmatpush1.msra.mxu0 0.0
    %2483 = vmatprep.subr.mxu0 0.0
    %2484 = vmatpush1.msra.mxu0 0.0
    %2485 = vmatprep.subr.mxu0 0.0
    %2486 = vmatpush1.msra.mxu0 0.0
    %2487 = vmatprep.subr.mxu0 0.0
    %2488 = vmatpush1.msra.mxu0 0.0
    %2489 = vmatprep.subr.mxu0 0.0
    %2490 = vmatpush1.msra.mxu0 0.0
    %2491 = vmatprep.subr.mxu0 0.0
    %2492 = vmatpush1.msra.mxu0 0.0
    %2493 = vmatprep.subr.mxu0 0.0
    %2494 = vmatpush1.msra.mxu0 0.0
    %2495 = vmatprep.subr.mxu0 0.0
    %2496 = vmatpush1.msra.mxu0 0.0
    %2497 = vmatprep.subr.mxu0 0.0
    %2498 = vmatpush1.msra.mxu0 0.0
    %2499 = vmatprep.subr.mxu0 0.0
    %2500 = vmatpush1.msra.mxu0 0.0
    %2501 = vmatprep.subr.mxu0 0.0
    %2502 = vmatpush1.msra.mxu0 0.0
    %2503 = vmatprep.subr.mxu0 0.0
    %2504 = vmatpush1.msra.mxu0 0.0
    %2505 = vmatprep.subr.mxu0 0.0
    %2506 = vmatpush1.msra.mxu0 0.0
    %2507 = vmatprep.subr.mxu0 0.0
    %2508 = vmatpush1.msra.mxu0 0.0
    %2509 = vmatprep.mubr.f32.mxu0 0.0
    %2510 = vmatmul.mubr.f32.gmra.mrb[0].mxu0 %v2227
    %v2511 = vpop.f32.mrb[0].mxu0
    %v2512 = vadd.f32 %v2442, %v2511
    %v2513 = vpop.f32.mrb[0].mxu0
    %2514 = vdwg.mxu0
    %v2515 = vld [vmem:[%s9] sm:$0x1]
    %v2517 = vlaneseq
    %v2518 = vshrl.u32 %v2517, 7
    %v2519 = vsub.s32 0, %v2518
    %v2520 = vrot.slane %v2515, %v2519
    %v2522 = vadd.f32 %v2512, %v2520
    %2523 = vst [vmem:[#allocation9] sm:$0x3] %v2522
    // Predicated region
    $region54: #{my_model_forward.1} parent=1 // pred_check
      _
    $region55: #{my_model_forward.1} parent=1 // pred_check_branch
      %2525 = sbr.rel (0) target = $region57
    $region56: #{my_model_forward.1} parent=1 // pred_region
      %s2527 = ssub.s32 32, 32
      %2528 = vsyncadd [#allocation5], %s2527
      %s2530 = sshll.u32 [#allocation9], 4
      %s2531 = int_to_ptr.vmem [resolvable:$true] %s2530
      %2533 = dma.vmem_to_hbm [thread:$0]  %s2531, 32, %s10, [#allocation5]
    $region57: #{my_model_forward.1} parent=1 // pred_fallthru
      _
    // Predicated region
    $region58: #{my_model_forward.1} parent=1 // pred_check
      _
    $region59: #{my_model_forward.1} parent=1 // pred_check_branch
      %2535 = sbr.rel (0) target = $region61
    $region60: #{my_model_forward.1} parent=1 // pred_region
      %2536 = dma.done [#allocation5], 32
    $region61: #{my_model_forward.1} parent=1 // pred_fallthru
      _
    %2537 = vsyncpa [#allocation4], 1
    %2538 = vsyncpa [#allocation7], 1
    %2539 = vsyncpa [#allocation5], 1

</llo_original>
